<compile_context>
chip_gen: v7x
topology: tpu7x:2x2x1
jax: 0.10.0
libtpu: 0.0.40
codegen_flags: <defaults>
</compile_context>

<pallas_src>
import math
import jax
import jax.numpy as jnp
from jax.experimental import pallas as pl
from jax.experimental.pallas import tpu as pltpu

C_IN = 128
C_OUT = 512
EPS = 1e-5
_INV_SQRT2 = 1.0 / math.sqrt(2.0)


def _ln_linear_gelu_kernel(x_ref, w_ref, b_ref, o_ref):
    # x_ref: (tm, 128); w_ref: (128, 512) [gamma pre-folded]; b_ref: (1, 512).
    x = x_ref[...]  # f32 in, no redundant casts

    # LayerNorm statistics over the last dim (eps=1e-5).  The elementwise
    # affine (gamma/beta) is folded into w_ref/b_ref on the host.
    mean = jnp.mean(x, axis=-1, keepdims=True)
    xc = x - mean
    var = jnp.mean(xc * xc, axis=-1, keepdims=True)
    xn = xc * jax.lax.rsqrt(var + EPS)

    # Linear: y = xn @ (gamma*W^T) + (beta@W^T + b)
    y = jnp.dot(xn, w_ref[...], preferred_element_type=jnp.float32)
    y = y + b_ref[...]

    # Exact GELU (PyTorch approximate='none'): 0.5*y*(1+erf(y/sqrt(2))).
    y = 0.5 * y * (1.0 + jax.lax.erf(y * _INV_SQRT2))

    # Dropout(p=0.0) is identity.
    o_ref[...] = y.astype(o_ref.dtype)


def _pick_row_tile(rows, target):
    """Largest multiple-of-8 divisor of `rows` that is <= target (exact tiling).

    Returns (tm, exact). Falls back to a ragged cdiv tiling if none exists.
    """
    hi = min(target, rows)
    hi -= hi % 8
    for t in range(hi, 7, -8):
        if rows % t == 0:
            return t, True
    # Fallback: ragged last block (Pallas clips the OOB part of the writeback).
    tm = max(8, min(target, ((rows + 7) // 8) * 8))
    return tm, False


def layernorm_linear_gelu(x, gamma, beta, w_t, b, *, tm_target=392):
    """x: (..., 128) float32  ->  (..., 512) float32."""
    orig_shape = x.shape
    rows = 1
    for d in orig_shape[:-1]:
        rows *= d
    x2 = x.reshape(rows, C_IN)

    # Fold the LayerNorm affine into the linear layer (one-time host transform):
    #   (xn*gamma + beta) @ W^T + b == xn @ (gamma[:,None]*W^T) + (beta@W^T + b)
    w_fold = (gamma.reshape(C_IN, 1) * w_t).astype(jnp.float32)      # (128, 512)
    b_fold = (beta.reshape(1, C_IN) @ w_t + b.reshape(1, C_OUT))     # (1, 512)
    b_fold = b_fold.astype(jnp.float32)

    # Row tile: exact divisor of `rows` when possible (default target 392 ->
    # 8 full steps for 3136 rows: even 4/4 split on v7x megacore, 4-8 steps of
    # ~1 MiB tiles to keep the HBM writeback pipeline full on v5e/v6e).
    tm, _exact = _pick_row_tile(rows, tm_target)
    grid = (pl.cdiv(rows, tm),)

    out = pl.pallas_call(
        _ln_linear_gelu_kernel,
        out_shape=jax.ShapeDtypeStruct((rows, C_OUT), x.dtype),
        grid_spec=pltpu.PrefetchScalarGridSpec(
            num_scalar_prefetch=0,
            grid=grid,
            in_specs=[
                pl.BlockSpec((tm, C_IN), lambda i: (i, 0)),
                # Constant operands: fixed (0, 0) index_map keeps the block
                # resident across the whole grid (no per-step re-DMA).
                pl.BlockSpec((C_IN, C_OUT), lambda i: (0, 0)),
                pl.BlockSpec((1, C_OUT), lambda i: (0, 0)),
            ],
            out_specs=pl.BlockSpec((tm, C_OUT), lambda i: (i, 0)),
        ),
        compiler_params=pltpu.CompilerParams(
            # Row axis is fully independent -> shardable across TCs (v7x).
            dimension_semantics=("parallel",)),
    )(x2, w_fold, b_fold)

    return out.reshape(*orig_shape[:-1], C_OUT)


if __name__ == "__main__":
    key = jax.random.PRNGKey(0)
    kx, kw, kb = jax.random.split(key, 3)

    # The module's forward shape: [1, 56, 56, 128] (C fixed by the LayerNorm /
    # Linear parameter shapes). 3136 rows -> tm=392, 8 exact grid steps.
    x = jax.random.normal(kx, (1, 56, 56, C_IN), dtype=jnp.float32)

    # Deterministic parameter init (shapes from the PyTorch module __init__).
    gamma = jnp.ones((C_IN,), dtype=jnp.float32)   # LayerNorm weight
    beta = jnp.zeros((C_IN,), dtype=jnp.float32)   # LayerNorm bias
    bound = 1.0 / math.sqrt(C_IN)
    w = jax.random.uniform(kw, (C_OUT, C_IN), dtype=jnp.float32,
                           minval=-bound, maxval=bound)   # PyTorch (out, in)
    b = jax.random.uniform(kb, (C_OUT,), dtype=jnp.float32,
                           minval=-bound, maxval=bound)
    w_t = jnp.transpose(w)  # kernel consumes (128, 512)

    out = layernorm_linear_gelu(x, gamma, beta, w_t, b)
    out = jax.block_until_ready(out)
    assert out.shape == (1, 56, 56, C_OUT), out.shape

    # Correctness check vs. pure-JAX reference (f32, unfused affine, exact GELU).
    def ref(x, gamma, beta, w, b):
        mean = jnp.mean(x, axis=-1, keepdims=True)
        var = jnp.mean((x - mean) ** 2, axis=-1, keepdims=True)
        xn = (x - mean) / jnp.sqrt(var + EPS) * gamma + beta
        y = jnp.dot(xn, w.T, precision=jax.lax.Precision.HIGHEST) + b
        return 0.5 * y * (1.0 + jax.lax.erf(y / math.sqrt(2.0)))

    r = ref(x, gamma, beta, w, b)
    assert jnp.allclose(out, r, atol=2e-4, rtol=2e-4), \
        float(jnp.max(jnp.abs(out - r)))

    print("KERNEL_OK")
</pallas_src>

<mosaic_0001>
module attributes {stable_mosaic.version = 11 : i64} {
  func.func @_ln_linear_gelu_kernel(%arg0: i32, %arg1: memref<392x128xf32, #tpu.memory_space<vmem>>, %arg2: memref<128x512xf32, #tpu.memory_space<vmem>>, %arg3: memref<1x512xf32, #tpu.memory_space<vmem>>, %arg4: memref<392x512xf32, #tpu.memory_space<vmem>>) attributes {dimension_semantics = [#tpu.dimension_semantics<parallel>], iteration_bounds = array<i64: 8>, scalar_prefetch = 0 : i64, scratch_operands = 0 : i64, tpu.core_type = #tpu.core_type<tc>, window_params = [{transform_indices = @transform_0, window_bounds = array<i64: 392, 128>}, {pipeline_mode = #tpu.pipeline_mode<synchronous>, transform_indices = @transform_1, window_bounds = array<i64: 128, 512>}, {pipeline_mode = #tpu.pipeline_mode<synchronous>, transform_indices = @transform_2, window_bounds = array<i64: 1, 512>}, {transform_indices = @transform_3, window_bounds = array<i64: 392, 512>}]} {
    %c0 = arith.constant 0 : index
    %c0_0 = arith.constant 0 : index
    %0 = vector.load %arg1[%c0, %c0_0] : memref<392x128xf32, #tpu.memory_space<vmem>>, vector<392x128xf32>
    %cst = arith.constant dense<0.000000e+00> : vector<392xf32>
    %1 = vector.multi_reduction <add>, %0, %cst [1] : vector<392x128xf32> to vector<392xf32>
    %2 = vector.shape_cast %1 : vector<392xf32> to vector<392x1xf32>
    %cst_1 = arith.constant 1.280000e+02 : f32
    %3 = vector.broadcast %cst_1 : f32 to vector<392x1xf32>
    %4 = arith.divf %2, %3 : vector<392x1xf32>
    %5 = vector.broadcast %4 : vector<392x1xf32> to vector<392x128xf32>
    %6 = arith.subf %0, %5 : vector<392x128xf32>
    %7 = arith.mulf %6, %6 : vector<392x128xf32>
    %cst_2 = arith.constant dense<0.000000e+00> : vector<392xf32>
    %8 = vector.multi_reduction <add>, %7, %cst_2 [1] : vector<392x128xf32> to vector<392xf32>
    %9 = vector.shape_cast %8 : vector<392xf32> to vector<392x1xf32>
    %cst_3 = arith.constant 1.280000e+02 : f32
    %10 = vector.broadcast %cst_3 : f32 to vector<392x1xf32>
    %11 = arith.divf %9, %10 : vector<392x1xf32>
    %cst_4 = arith.constant 9.99999974E-6 : f32
    %12 = vector.broadcast %cst_4 : f32 to vector<392x1xf32>
    %13 = arith.addf %11, %12 : vector<392x1xf32>
    %14 = math.rsqrt %13 : vector<392x1xf32>
    %15 = vector.broadcast %14 : vector<392x1xf32> to vector<392x128xf32>
    %16 = arith.mulf %6, %15 : vector<392x128xf32>
    %c0_5 = arith.constant 0 : index
    %c0_6 = arith.constant 0 : index
    %17 = vector.load %arg2[%c0_5, %c0_6] : memref<128x512xf32, #tpu.memory_space<vmem>>, vector<128x512xf32>
    %cst_7 = arith.constant dense<0.000000e+00> : vector<392x512xf32>
    %18 = tpu.matmul %16, %17, %cst_7 {dimension_numbers = #tpu.dot_dimension_numbers<[1], [0], [0], [1], [0, 0, 1, 1], [], []>} : vector<392x128xf32>, vector<128x512xf32>, vector<392x512xf32> -> vector<392x512xf32>
    %c0_8 = arith.constant 0 : index
    %c0_9 = arith.constant 0 : index
    %19 = vector.load %arg3[%c0_8, %c0_9] : memref<1x512xf32, #tpu.memory_space<vmem>>, vector<1x512xf32>
    %20 = vector.broadcast %19 : vector<1x512xf32> to vector<392x512xf32>
    %21 = arith.addf %18, %20 : vector<392x512xf32>
    %cst_10 = arith.constant 5.000000e-01 : f32
    %22 = vector.broadcast %cst_10 : f32 to vector<392x512xf32>
    %23 = arith.mulf %22, %21 : vector<392x512xf32>
    %cst_11 = arith.constant 0.707106769 : f32
    %24 = vector.broadcast %cst_11 : f32 to vector<392x512xf32>
    %25 = arith.mulf %21, %24 : vector<392x512xf32>
    %26 = math.erf %25 : vector<392x512xf32>
    %cst_12 = arith.constant 1.000000e+00 : f32
    %27 = vector.broadcast %cst_12 : f32 to vector<392x512xf32>
    %28 = arith.addf %27, %26 : vector<392x512xf32>
    %29 = arith.mulf %23, %28 : vector<392x512xf32>
    %c0_13 = arith.constant 0 : index
    %c0_14 = arith.constant 0 : index
    %30 = vector.load %arg4[%c0_13, %c0_14] : memref<392x512xf32, #tpu.memory_space<vmem>>, vector<392x512xf32>
    tpu.vector_store %arg4[%c0_13, %c0_14], %29 {strides = array<i32>} : memref<392x512xf32, #tpu.memory_space<vmem>>, vector<392x512xf32>,
    return
  }
  func.func @transform_0(%arg0: i32) -> (i32, i32) {
    %c0_i32 = arith.constant 0 : i32
    %c0_i32_0 = arith.constant 0 : i32
    return %arg0, %c0_i32 : i32, i32
  }
  func.func @transform_1(%arg0: i32) -> (i32, i32) {
    %c0_i32 = arith.constant 0 : i32
    %c0_i32_0 = arith.constant 0 : i32
    %c0_i32_1 = arith.constant 0 : i32
    return %c0_i32, %c0_i32_0 : i32, i32
  }
  func.func @transform_2(%arg0: i32) -> (i32, i32) {
    %c0_i32 = arith.constant 0 : i32
    %c0_i32_0 = arith.constant 0 : i32
    %c0_i32_1 = arith.constant 0 : i32
    return %c0_i32, %c0_i32_0 : i32, i32
  }
  func.func @transform_3(%arg0: i32) -> (i32, i32) {
    %c0_i32 = arith.constant 0 : i32
    %c0_i32_0 = arith.constant 0 : i32
    return %arg0, %c0_i32 : i32, i32
  }
}

</mosaic_0001>

<llo_original>
// kernel: tpu_custom_call.1
$region0: #{tpu_custom_call.1}
  #allocation0 [shape = 'u32[]', space=smem, size = 0x4, offset = 0x4, fixed_abs, tag = 'smem constant byte address 0x4 - core index']
  #allocation1 [shape = 'u32[144,128]{1,0:T(1,128)}', space=vmem, size = 0x12000, scoped, tag = 'internal scratch']
  %s0 = inlined_call_operand.hbm [shape: f32[3136,128], index: 0, kind: input, shape index: {}]
  %s1 = inlined_call_operand.hbm [shape: f32[128,512], index: 1, kind: input, shape index: {}]
  %s2 = inlined_call_operand.hbm [shape: f32[1,512], index: 2, kind: input, shape index: {}]
  %s3 = inlined_call_operand.hbm [shape: f32[3136,512], index: 3, kind: output, shape index: {}]
  %s4 = sld [smem:[#allocation0]]
  $region57: #{tpu_custom_call.1} parent=0
    _
  %s6 = ssub.s32 1, %s4
  %s7 = scalar_select 0, %s6, %s4
  $region1: #{tpu_custom_call.1} parent=0
    #allocation2 [shape = 'u8[401408]{0}', space=vmem, size = 0x62000, scoped, tag = 'input window, operand 0']
    #allocation3 [shape = 's32[2]{0}', space=sflag, size = 0x8, scoped, tag = 'scoped memory for tpu_custom_call.1']
    #allocation4 [shape = 's32[2]{0}', space=sflag, size = 0x8, scoped, tag = 'scoped memory for tpu_custom_call.1']
    #allocation5 [shape = 'u8[262144]{0}', space=vmem, size = 0x40000, scoped, tag = 'input window, operand 1, single buffered']
    #allocation6 [shape = 's32[1]{0}', space=sflag, size = 0x4, scoped, tag = 'scoped memory for tpu_custom_call.1']
    #allocation7 [shape = 'u8[2048]{0}', space=vmem, size = 0x800, scoped, tag = 'input window, operand 2, single buffered']
    #allocation8 [shape = 'u8[1605632]{0}', space=vmem, size = 0x188000, scoped, tag = 'output window, operand 0']
    %8 = vsyncpa [#allocation3], 0
    %s9 = scalar_lea.sflag [#allocation3], 1
    %10 = vsyncpa %s9, 0
    %11 = vsyncpa [#allocation6], 0
    %12 = vsyncpa [#allocation4], 0
    %s13 = scalar_lea.sflag [#allocation4], 1
    %14 = vsyncpa %s13, 0
    loop: start=0, step=1, limit=10
    $region2: #{tpu_custom_call.1} parent=1 // loop_pre_header
      _
    $region3: #{tpu_custom_call.1} parent=1 // loop_header
      %s16 = sphi 0, %s20
      %p17 = scmp.ge.s32.totalorder %s16, 10
      %s26 = sphi 0, %s28
      %s29 = sphi 0, %s26
      %s30 = sphi 0, %s29
      %s46 = sphi 0, %s30
      %s50 = sphi 0, %s50
      %s52 = sphi 0, %s50
      %s53 = sphi 0, %s52
      %s67 = sphi 0, %s53
      %s71 = sphi 0, %s71
      %s73 = sphi 0, %s71
      %s74 = sphi 0, %s73
      %s88 = sphi 0, %s74
      %s94 = sphi 0, %s96
      %s97 = sphi 0, %s94
      %s98 = sphi 0, %s97
      %s114 = sphi 0, %s98
    $region4: #{tpu_custom_call.1} parent=1 // loop_header_branch
      %19 = sbr.rel (%p17) target = $region8
    $region5: #{tpu_custom_call.1} parent=1 // loop_body
      %s21 = ssub.s32 %s16, 1
      %s22 = ssub.s32 %s16, 2
      %s23 = sadd.s32 %s16, 1
      %s24 = ssub.s32 %s16, %s23
      %p25 = scmp.eq.s32.totalorder %s24, 0
      %s27 = sadd.s32 %s26, 1
      %s28 = scalar_select %p25, %s26, %s27
      %p31 = pneg %p25
      %p32 = scmp.eq.s32.totalorder %s16, 7
      %p33 = por %p31, %p32
      %p34 = scmp.ne.s32.totalorder %s26, %s29
      %p35 = scmp.eq.s32.totalorder %s16, 0
      %p36 = por %p34, %p35
      %p37 = scmp.ne.s32.totalorder %s26, %s29
      %p38 = scmp.eq.s32.totalorder %s21, 7
      %p39 = por %p37, %p38
      %p40 = scmp.ne.s32.totalorder %s29, %s30
      %p41 = scmp.eq.s32.totalorder %s21, 0
      %p42 = por %p40, %p41
      %p43 = scmp.ne.s32.totalorder %s29, %s30
      %p44 = scmp.eq.s32.totalorder %s22, 7
      %p45 = por %p43, %p44
      %p47 = scmp.ne.s32.totalorder %s30, %s46
      %p48 = scmp.eq.s32.totalorder %s22, 0
      %p49 = por %p47, %p48
      %s51 = sadd.s32 %s50, 1
      %p54 = scmp.eq.s32.totalorder %s16, 7
      %p55 = scmp.ne.s32.totalorder %s50, %s52
      %p56 = scmp.eq.s32.totalorder %s16, 0
      %p57 = por %p55, %p56
      %p58 = scmp.ne.s32.totalorder %s50, %s52
      %p59 = scmp.eq.s32.totalorder %s21, 7
      %p60 = por %p58, %p59
      %p61 = scmp.ne.s32.totalorder %s52, %s53
      %p62 = scmp.eq.s32.totalorder %s21, 0
      %p63 = por %p61, %p62
      %p64 = scmp.ne.s32.totalorder %s52, %s53
      %p65 = scmp.eq.s32.totalorder %s22, 7
      %p66 = por %p64, %p65
      %p68 = scmp.ne.s32.totalorder %s53, %s67
      %p69 = scmp.eq.s32.totalorder %s22, 0
      %p70 = por %p68, %p69
      %s72 = sadd.s32 %s71, 1
      %p75 = scmp.eq.s32.totalorder %s16, 7
      %p76 = scmp.ne.s32.totalorder %s71, %s73
      %p77 = scmp.eq.s32.totalorder %s16, 0
      %p78 = por %p76, %p77
      %p79 = scmp.ne.s32.totalorder %s71, %s73
      %p80 = scmp.eq.s32.totalorder %s21, 7
      %p81 = por %p79, %p80
      %p82 = scmp.ne.s32.totalorder %s73, %s74
      %p83 = scmp.eq.s32.totalorder %s21, 0
      %p84 = por %p82, %p83
      %p85 = scmp.ne.s32.totalorder %s73, %s74
      %p86 = scmp.eq.s32.totalorder %s22, 7
      %p87 = por %p85, %p86
      %p89 = scmp.ne.s32.totalorder %s74, %s88
      %p90 = scmp.eq.s32.totalorder %s22, 0
      %p91 = por %p89, %p90
      %s92 = ssub.s32 %s16, %s23
      %p93 = scmp.eq.s32.totalorder %s92, 0
      %s95 = sadd.s32 %s94, 1
      %s96 = scalar_select %p93, %s94, %s95
      %p99 = pneg %p93
      %p100 = scmp.eq.s32.totalorder %s16, 7
      %p101 = por %p99, %p100
      %p102 = scmp.ne.s32.totalorder %s94, %s97
      %p103 = scmp.eq.s32.totalorder %s16, 0
      %p104 = por %p102, %p103
      %p105 = scmp.ne.s32.totalorder %s94, %s97
      %p106 = scmp.eq.s32.totalorder %s21, 7
      %p107 = por %p105, %p106
      %p108 = scmp.ne.s32.totalorder %s97, %s98
      %p109 = scmp.eq.s32.totalorder %s21, 0
      %p110 = por %p108, %p109
      %p111 = scmp.ne.s32.totalorder %s97, %s98
      %p112 = scmp.eq.s32.totalorder %s22, 7
      %p113 = por %p111, %p112
      %p115 = scmp.ne.s32.totalorder %s98, %s114
      %p116 = scmp.eq.s32.totalorder %s22, 0
      %p117 = por %p115, %p116
      %p118 = scmp.le.s32.totalorder 1, %s16
      %p119 = scmp.lt.s32.totalorder %s16, 9
      %p120 = pnand %p118, %p119
      %p121 = pneg %p120
      // Predicated region
      $region9: #{tpu_custom_call.1} parent=5 // pred_check
        _
      $region10: #{tpu_custom_call.1} parent=5 // pred_check_branch
        %123 = sbr.rel (%p120) target = $region12
      $region11: #{tpu_custom_call.1} parent=5 // pred_region
        %s124 = ssub.s32 %s16, 1
        // Predicated region
        $region13: #{tpu_custom_call.1} parent=11 // pred_check
          %p125 = pneg %p63
        $region14: #{tpu_custom_call.1} parent=11 // pred_check_branch
          %127 = sbr.rel (%p125) target = $region16
        $region15: #{tpu_custom_call.1} parent=11 // pred_region
          %s129 = ssub.s32 8192, 8192
          %130 = vsyncadd [#allocation6], %s129
          %s131 = sshll.u32 [#allocation5], 4
          %s132 = int_to_ptr.vmem [resolvable:$true] %s131
          %137 = dma.hbm_to_vmem [thread:$0]  %s1, 8192, %s132, [#allocation6], 512, 512, 32
        $region16: #{tpu_custom_call.1} parent=11 // pred_fallthru
          _
        // Predicated region
        $region17: #{tpu_custom_call.1} parent=11 // pred_check
          %p138 = pneg %p84
        $region18: #{tpu_custom_call.1} parent=11 // pred_check_branch
          %140 = sbr.rel (%p138) target = $region20
        $region19: #{tpu_custom_call.1} parent=11 // pred_region
          %s142 = ssub.s32 64, 64
          %143 = vsyncadd [#allocation6], %s142
          %s145 = sshll.u32 [#allocation7], 4
          %s146 = int_to_ptr.vmem [resolvable:$true] %s145
          %148 = dma.hbm_to_vmem [thread:$0]  %s2, 64, %s146, [#allocation6]
        $region20: #{tpu_custom_call.1} parent=11 // pred_fallthru
          _
      $region12: #{tpu_custom_call.1} parent=5 // pred_fallthru
        _
      %p149 = scmp.lt.s32.totalorder %s16, 8
      // Predicated region
      $region21: #{tpu_custom_call.1} parent=5 // pred_check
        %p150 = pneg %p149
      $region22: #{tpu_custom_call.1} parent=5 // pred_check_branch
        %152 = sbr.rel (%p150) target = $region24
      $region23: #{tpu_custom_call.1} parent=5 // pred_region
        // Predicated region
        $region25: #{tpu_custom_call.1} parent=23 // pred_check
          %p153 = pneg %p36
        $region26: #{tpu_custom_call.1} parent=23 // pred_check_branch
          %155 = sbr.rel (%p153) target = $region28
        $region27: #{tpu_custom_call.1} parent=23 // pred_region
          %s156 = sand.u32 %s26, 1
          %s157 = scalar_lea.sflag [#allocation3], %s156
          %s158 = sand.u32 %s26, 1
          %s159 = smul.addr %s158, 392
          %s160 = scalar_lea.vmem [#allocation2], %s159
          %s161 = smul.u32 49, %s16
          %s163 = ssub.s32 6272, 6272
          %164 = vsyncadd %s157, %s163
          %s165 = smul.addr %s161, 128
          %s166 = scalar_lea.hbm %s0, %s165
          %s167 = sshll.u32 %s160, 4
          %s168 = int_to_ptr.vmem [resolvable:$true] %s167
          %173 = dma.hbm_to_vmem [thread:$0]  %s166, 6272, %s168, %s157, 128, 128, 8
        $region28: #{tpu_custom_call.1} parent=23 // pred_fallthru
          _
      $region24: #{tpu_custom_call.1} parent=5 // pred_fallthru
        _
      %p174 = scmp.le.s32.totalorder 1, %s16
      %p175 = scmp.lt.s32.totalorder %s16, 9
      %p176 = pnand %p174, %p175
      %p177 = pneg %p176
      // Predicated region
      $region29: #{tpu_custom_call.1} parent=5 // pred_check
        _
      $region30: #{tpu_custom_call.1} parent=5 // pred_check_branch
        %179 = sbr.rel (%p176) target = $region32
      $region31: #{tpu_custom_call.1} parent=5 // pred_region
        %s180 = ssub.s32 %s16, 1
        %s181 = sand.u32 %s29, 1
        %s182 = scalar_lea.sflag [#allocation3], %s181
        %s183 = sand.u32 %s29, 1
        %s184 = smul.addr %s183, 392
        %s185 = scalar_lea.vmem [#allocation2], %s184
        // Predicated region
        $region33: #{tpu_custom_call.1} parent=31 // pred_check
          %p186 = pneg %p42
        $region34: #{tpu_custom_call.1} parent=31 // pred_check_branch
          %188 = sbr.rel (%p186) target = $region36
        $region35: #{tpu_custom_call.1} parent=31 // pred_region
          %189 = dma.done %s182, 6272
        $region36: #{tpu_custom_call.1} parent=31 // pred_fallthru
          _
        // Predicated region
        $region37: #{tpu_custom_call.1} parent=31 // pred_check
          %p190 = pneg %p63
        $region38: #{tpu_custom_call.1} parent=31 // pred_check_branch
          %192 = sbr.rel (%p190) target = $region40
        $region39: #{tpu_custom_call.1} parent=31 // pred_region
          %193 = dma.done [#allocation6], 8192
        $region40: #{tpu_custom_call.1} parent=31 // pred_fallthru
          _
        // Predicated region
        $region41: #{tpu_custom_call.1} parent=31 // pred_check
          %p194 = pneg %p84
        $region42: #{tpu_custom_call.1} parent=31 // pred_check_branch
          %196 = sbr.rel (%p194) target = $region44
        $region43: #{tpu_custom_call.1} parent=31 // pred_region
          %197 = dma.done [#allocation6], 64
        $region44: #{tpu_custom_call.1} parent=31 // pred_fallthru
          _
        %s198 = sand.u32 %s29, 1
        %s199 = scalar_lea.sflag [#allocation3], %s198
        %s200 = sand.u32 %s29, 1
        %s201 = smul.addr %s200, 392
        %s202 = scalar_lea.vmem [#allocation2], %s201
        %p203 = pneg %p42
        %p204 = pneg %p39
        %p205 = pneg %p63
        %p206 = pneg %p60
        %p207 = pneg %p84
        %p208 = pneg %p81
        %p209 = pneg %p110
        %p210 = pneg %p107
        %s211 = sand.u32 %s97, 1
        %s212 = scalar_lea.sflag [#allocation4], %s211
        %s213 = sand.u32 %s97, 1
        %s214 = smul.addr %s213, 1568
        %s215 = scalar_lea.vmem [#allocation8], %s214
        %s216 = smul.u32 49, %s21
        %s217 = smul.u32 49, %s21
        %v218 = vld [vmem:[%s185] sm:$0xff]
        %v219 = vld [vmem:[%s185 + $0x8] sm:$0xff]
        %v220 = vld [vmem:[%s185 + $0x10] sm:$0xff]
        %v221 = vld [vmem:[%s185 + $0x18] sm:$0xff]
        %v222 = vld [vmem:[%s185 + $0x20] sm:$0xff]
        %v223 = vld [vmem:[%s185 + $0x28] sm:$0xff]
        %v224 = vld [vmem:[%s185 + $0x30] sm:$0xff]
        %v225 = vld [vmem:[%s185 + $0x38] sm:$0xff]
        %v226 = vld [vmem:[%s185 + $0x40] sm:$0xff]
        %v227 = vld [vmem:[%s185 + $0x48] sm:$0xff]
        %v228 = vld [vmem:[%s185 + $0x50] sm:$0xff]
        %v229 = vld [vmem:[%s185 + $0x58] sm:$0xff]
        %v230 = vld [vmem:[%s185 + $0x60] sm:$0xff]
        %v231 = vld [vmem:[%s185 + $0x68] sm:$0xff]
        %v232 = vld [vmem:[%s185 + $0x70] sm:$0xff]
        %v233 = vld [vmem:[%s185 + $0x78] sm:$0xff]
        %v234 = vld [vmem:[%s185 + $0x80] sm:$0xff]
        %v235 = vld [vmem:[%s185 + $0x88] sm:$0xff]
        %v236 = vld [vmem:[%s185 + $0x90] sm:$0xff]
        %v237 = vld [vmem:[%s185 + $0x98] sm:$0xff]
        %v238 = vld [vmem:[%s185 + $0xa0] sm:$0xff]
        %v239 = vld [vmem:[%s185 + $0xa8] sm:$0xff]
        %v240 = vld [vmem:[%s185 + $0xb0] sm:$0xff]
        %v241 = vld [vmem:[%s185 + $0xb8] sm:$0xff]
        %v242 = vld [vmem:[%s185 + $0xc0] sm:$0xff]
        %v243 = vld [vmem:[%s185 + $0xc8] sm:$0xff]
        %v244 = vld [vmem:[%s185 + $0xd0] sm:$0xff]
        %v245 = vld [vmem:[%s185 + $0xd8] sm:$0xff]
        %v246 = vld [vmem:[%s185 + $0xe0] sm:$0xff]
        %v247 = vld [vmem:[%s185 + $0xe8] sm:$0xff]
        %v248 = vld [vmem:[%s185 + $0xf0] sm:$0xff]
        %v249 = vld [vmem:[%s185 + $0xf8] sm:$0xff]
        %v250 = vld [vmem:[%s185 + $0x100] sm:$0xff]
        %v251 = vld [vmem:[%s185 + $0x108] sm:$0xff]
        %v252 = vld [vmem:[%s185 + $0x110] sm:$0xff]
        %v253 = vld [vmem:[%s185 + $0x118] sm:$0xff]
        %v254 = vld [vmem:[%s185 + $0x120] sm:$0xff]
        %v255 = vld [vmem:[%s185 + $0x128] sm:$0xff]
        %v256 = vld [vmem:[%s185 + $0x130] sm:$0xff]
        %v257 = vld [vmem:[%s185 + $0x138] sm:$0xff]
        %v258 = vld [vmem:[%s185 + $0x140] sm:$0xff]
        %v259 = vld [vmem:[%s185 + $0x148] sm:$0xff]
        %v260 = vld [vmem:[%s185 + $0x150] sm:$0xff]
        %v261 = vld [vmem:[%s185 + $0x158] sm:$0xff]
        %v262 = vld [vmem:[%s185 + $0x160] sm:$0xff]
        %v263 = vld [vmem:[%s185 + $0x168] sm:$0xff]
        %v264 = vld [vmem:[%s185 + $0x170] sm:$0xff]
        %v265 = vld [vmem:[%s185 + $0x178] sm:$0xff]
        %v266 = vld [vmem:[%s185 + $0x180] sm:$0xff]
        %267 = vadd.xlane.f32.xlu0 %v218
        %v268 = vpop.xlane.xlu0 %267
        %269 = vadd.xlane.f32.xlu0 %v219
        %v270 = vpop.xlane.xlu0 %269
        %271 = vadd.xlane.f32.xlu0 %v220
        %v272 = vpop.xlane.xlu0 %271
        %273 = vadd.xlane.f32.xlu0 %v221
        %v274 = vpop.xlane.xlu0 %273
        %275 = vadd.xlane.f32.xlu0 %v222
        %v276 = vpop.xlane.xlu0 %275
        %277 = vadd.xlane.f32.xlu0 %v223
        %v278 = vpop.xlane.xlu0 %277
        %279 = vadd.xlane.f32.xlu0 %v224
        %v280 = vpop.xlane.xlu0 %279
        %281 = vadd.xlane.f32.xlu0 %v225
        %v282 = vpop.xlane.xlu0 %281
        %283 = vadd.xlane.f32.xlu0 %v226
        %v284 = vpop.xlane.xlu0 %283
        %285 = vadd.xlane.f32.xlu0 %v227
        %v286 = vpop.xlane.xlu0 %285
        %287 = vadd.xlane.f32.xlu0 %v228
        %v288 = vpop.xlane.xlu0 %287
        %289 = vadd.xlane.f32.xlu0 %v229
        %v290 = vpop.xlane.xlu0 %289
        %291 = vadd.xlane.f32.xlu0 %v230
        %v292 = vpop.xlane.xlu0 %291
        %293 = vadd.xlane.f32.xlu0 %v231
        %v294 = vpop.xlane.xlu0 %293
        %295 = vadd.xlane.f32.xlu0 %v232
        %v296 = vpop.xlane.xlu0 %295
        %297 = vadd.xlane.f32.xlu0 %v233
        %v298 = vpop.xlane.xlu0 %297
        %299 = vadd.xlane.f32.xlu0 %v234
        %v300 = vpop.xlane.xlu0 %299
        %301 = vadd.xlane.f32.xlu0 %v235
        %v302 = vpop.xlane.xlu0 %301
        %303 = vadd.xlane.f32.xlu0 %v236
        %v304 = vpop.xlane.xlu0 %303
        %305 = vadd.xlane.f32.xlu0 %v237
        %v306 = vpop.xlane.xlu0 %305
        %307 = vadd.xlane.f32.xlu0 %v238
        %v308 = vpop.xlane.xlu0 %307
        %309 = vadd.xlane.f32.xlu0 %v239
        %v310 = vpop.xlane.xlu0 %309
        %311 = vadd.xlane.f32.xlu0 %v240
        %v312 = vpop.xlane.xlu0 %311
        %313 = vadd.xlane.f32.xlu0 %v241
        %v314 = vpop.xlane.xlu0 %313
        %315 = vadd.xlane.f32.xlu0 %v242
        %v316 = vpop.xlane.xlu0 %315
        %317 = vadd.xlane.f32.xlu0 %v243
        %v318 = vpop.xlane.xlu0 %317
        %319 = vadd.xlane.f32.xlu0 %v244
        %v320 = vpop.xlane.xlu0 %319
        %321 = vadd.xlane.f32.xlu0 %v245
        %v322 = vpop.xlane.xlu0 %321
        %323 = vadd.xlane.f32.xlu0 %v246
        %v324 = vpop.xlane.xlu0 %323
        %325 = vadd.xlane.f32.xlu0 %v247
        %v326 = vpop.xlane.xlu0 %325
        %327 = vadd.xlane.f32.xlu0 %v248
        %v328 = vpop.xlane.xlu0 %327
        %329 = vadd.xlane.f32.xlu0 %v249
        %v330 = vpop.xlane.xlu0 %329
        %331 = vadd.xlane.f32.xlu0 %v250
        %v332 = vpop.xlane.xlu0 %331
        %333 = vadd.xlane.f32.xlu0 %v251
        %v334 = vpop.xlane.xlu0 %333
        %335 = vadd.xlane.f32.xlu0 %v252
        %v336 = vpop.xlane.xlu0 %335
        %337 = vadd.xlane.f32.xlu0 %v253
        %v338 = vpop.xlane.xlu0 %337
        %339 = vadd.xlane.f32.xlu0 %v254
        %v340 = vpop.xlane.xlu0 %339
        %341 = vadd.xlane.f32.xlu0 %v255
        %v342 = vpop.xlane.xlu0 %341
        %343 = vadd.xlane.f32.xlu0 %v256
        %v344 = vpop.xlane.xlu0 %343
        %345 = vadd.xlane.f32.xlu0 %v257
        %v346 = vpop.xlane.xlu0 %345
        %347 = vadd.xlane.f32.xlu0 %v258
        %v348 = vpop.xlane.xlu0 %347
        %349 = vadd.xlane.f32.xlu0 %v259
        %v350 = vpop.xlane.xlu0 %349
        %351 = vadd.xlane.f32.xlu0 %v260
        %v352 = vpop.xlane.xlu0 %351
        %353 = vadd.xlane.f32.xlu0 %v261
        %v354 = vpop.xlane.xlu0 %353
        %355 = vadd.xlane.f32.xlu0 %v262
        %v356 = vpop.xlane.xlu0 %355
        %357 = vadd.xlane.f32.xlu0 %v263
        %v358 = vpop.xlane.xlu0 %357
        %359 = vadd.xlane.f32.xlu0 %v264
        %v360 = vpop.xlane.xlu0 %359
        %361 = vadd.xlane.f32.xlu0 %v265
        %v362 = vpop.xlane.xlu0 %361
        %363 = vadd.xlane.f32.xlu0 %v266
        %v364 = vpop.xlane.xlu0 %363
        %v365 = vrcp.pop 128.0
        %v366 = vmul.f32 %v268, %v365
        %v367 = vmul.f32 %v270, %v365
        %v368 = vmul.f32 %v272, %v365
        %v369 = vmul.f32 %v274, %v365
        %v370 = vmul.f32 %v276, %v365
        %v371 = vmul.f32 %v278, %v365
        %v372 = vmul.f32 %v280, %v365
        %v373 = vmul.f32 %v282, %v365
        %v374 = vmul.f32 %v284, %v365
        %v375 = vmul.f32 %v286, %v365
        %v376 = vmul.f32 %v288, %v365
        %v377 = vmul.f32 %v290, %v365
        %v378 = vmul.f32 %v292, %v365
        %v379 = vmul.f32 %v294, %v365
        %v380 = vmul.f32 %v296, %v365
        %v381 = vmul.f32 %v298, %v365
        %v382 = vmul.f32 %v300, %v365
        %v383 = vmul.f32 %v302, %v365
        %v384 = vmul.f32 %v304, %v365
        %v385 = vmul.f32 %v306, %v365
        %v386 = vmul.f32 %v308, %v365
        %v387 = vmul.f32 %v310, %v365
        %v388 = vmul.f32 %v312, %v365
        %v389 = vmul.f32 %v314, %v365
        %v390 = vmul.f32 %v316, %v365
        %v391 = vmul.f32 %v318, %v365
        %v392 = vmul.f32 %v320, %v365
        %v393 = vmul.f32 %v322, %v365
        %v394 = vmul.f32 %v324, %v365
        %v395 = vmul.f32 %v326, %v365
        %v396 = vmul.f32 %v328, %v365
        %v397 = vmul.f32 %v330, %v365
        %v398 = vmul.f32 %v332, %v365
        %v399 = vmul.f32 %v334, %v365
        %v400 = vmul.f32 %v336, %v365
        %v401 = vmul.f32 %v338, %v365
        %v402 = vmul.f32 %v340, %v365
        %v403 = vmul.f32 %v342, %v365
        %v404 = vmul.f32 %v344, %v365
        %v405 = vmul.f32 %v346, %v365
        %v406 = vmul.f32 %v348, %v365
        %v407 = vmul.f32 %v350, %v365
        %v408 = vmul.f32 %v352, %v365
        %v409 = vmul.f32 %v354, %v365
        %v410 = vmul.f32 %v356, %v365
        %v411 = vmul.f32 %v358, %v365
        %v412 = vmul.f32 %v360, %v365
        %v413 = vmul.f32 %v362, %v365
        %v414 = vmul.f32 %v364, %v365
        %v415 = vsub.f32 %v218, %v366
        %v416 = vsub.f32 %v219, %v367
        %v417 = vsub.f32 %v220, %v368
        %v418 = vsub.f32 %v221, %v369
        %v419 = vsub.f32 %v222, %v370
        %v420 = vsub.f32 %v223, %v371
        %v421 = vsub.f32 %v224, %v372
        %v422 = vsub.f32 %v225, %v373
        %v423 = vsub.f32 %v226, %v374
        %v424 = vsub.f32 %v227, %v375
        %v425 = vsub.f32 %v228, %v376
        %v426 = vsub.f32 %v229, %v377
        %v427 = vsub.f32 %v230, %v378
        %v428 = vsub.f32 %v231, %v379
        %v429 = vsub.f32 %v232, %v380
        %v430 = vsub.f32 %v233, %v381
        %v431 = vsub.f32 %v234, %v382
        %v432 = vsub.f32 %v235, %v383
        %v433 = vsub.f32 %v236, %v384
        %v434 = vsub.f32 %v237, %v385
        %v435 = vsub.f32 %v238, %v386
        %v436 = vsub.f32 %v239, %v387
        %v437 = vsub.f32 %v240, %v388
        %v438 = vsub.f32 %v241, %v389
        %v439 = vsub.f32 %v242, %v390
        %v440 = vsub.f32 %v243, %v391
        %v441 = vsub.f32 %v244, %v392
        %v442 = vsub.f32 %v245, %v393
        %v443 = vsub.f32 %v246, %v394
        %v444 = vsub.f32 %v247, %v395
        %v445 = vsub.f32 %v248, %v396
        %v446 = vsub.f32 %v249, %v397
        %v447 = vsub.f32 %v250, %v398
        %v448 = vsub.f32 %v251, %v399
        %v449 = vsub.f32 %v252, %v400
        %v450 = vsub.f32 %v253, %v401
        %v451 = vsub.f32 %v254, %v402
        %v452 = vsub.f32 %v255, %v403
        %v453 = vsub.f32 %v256, %v404
        %v454 = vsub.f32 %v257, %v405
        %v455 = vsub.f32 %v258, %v406
        %v456 = vsub.f32 %v259, %v407
        %v457 = vsub.f32 %v260, %v408
        %v458 = vsub.f32 %v261, %v409
        %v459 = vsub.f32 %v262, %v410
        %v460 = vsub.f32 %v263, %v411
        %v461 = vsub.f32 %v264, %v412
        %v462 = vsub.f32 %v265, %v413
        %v463 = vsub.f32 %v266, %v414
        %v464 = vmul.f32 %v415, %v415
        %v465 = vmul.f32 %v416, %v416
        %v466 = vmul.f32 %v417, %v417
        %v467 = vmul.f32 %v418, %v418
        %v468 = vmul.f32 %v419, %v419
        %v469 = vmul.f32 %v420, %v420
        %v470 = vmul.f32 %v421, %v421
        %v471 = vmul.f32 %v422, %v422
        %v472 = vmul.f32 %v423, %v423
        %v473 = vmul.f32 %v424, %v424
        %v474 = vmul.f32 %v425, %v425
        %v475 = vmul.f32 %v426, %v426
        %v476 = vmul.f32 %v427, %v427
        %v477 = vmul.f32 %v428, %v428
        %v478 = vmul.f32 %v429, %v429
        %v479 = vmul.f32 %v430, %v430
        %v480 = vmul.f32 %v431, %v431
        %v481 = vmul.f32 %v432, %v432
        %v482 = vmul.f32 %v433, %v433
        %v483 = vmul.f32 %v434, %v434
        %v484 = vmul.f32 %v435, %v435
        %v485 = vmul.f32 %v436, %v436
        %v486 = vmul.f32 %v437, %v437
        %v487 = vmul.f32 %v438, %v438
        %v488 = vmul.f32 %v439, %v439
        %v489 = vmul.f32 %v440, %v440
        %v490 = vmul.f32 %v441, %v441
        %v491 = vmul.f32 %v442, %v442
        %v492 = vmul.f32 %v443, %v443
        %v493 = vmul.f32 %v444, %v444
        %v494 = vmul.f32 %v445, %v445
        %v495 = vmul.f32 %v446, %v446
        %v496 = vmul.f32 %v447, %v447
        %v497 = vmul.f32 %v448, %v448
        %v498 = vmul.f32 %v449, %v449
        %v499 = vmul.f32 %v450, %v450
        %v500 = vmul.f32 %v451, %v451
        %v501 = vmul.f32 %v452, %v452
        %v502 = vmul.f32 %v453, %v453
        %v503 = vmul.f32 %v454, %v454
        %v504 = vmul.f32 %v455, %v455
        %v505 = vmul.f32 %v456, %v456
        %v506 = vmul.f32 %v457, %v457
        %v507 = vmul.f32 %v458, %v458
        %v508 = vmul.f32 %v459, %v459
        %v509 = vmul.f32 %v460, %v460
        %v510 = vmul.f32 %v461, %v461
        %v511 = vmul.f32 %v462, %v462
        %v512 = vmul.f32 %v463, %v463
        %513 = vadd.xlane.f32.xlu0 %v464
        %v514 = vpop.xlane.xlu0 %513
        %515 = vadd.xlane.f32.xlu0 %v465
        %v516 = vpop.xlane.xlu0 %515
        %517 = vadd.xlane.f32.xlu0 %v466
        %v518 = vpop.xlane.xlu0 %517
        %519 = vadd.xlane.f32.xlu0 %v467
        %v520 = vpop.xlane.xlu0 %519
        %521 = vadd.xlane.f32.xlu0 %v468
        %v522 = vpop.xlane.xlu0 %521
        %523 = vadd.xlane.f32.xlu0 %v469
        %v524 = vpop.xlane.xlu0 %523
        %525 = vadd.xlane.f32.xlu0 %v470
        %v526 = vpop.xlane.xlu0 %525
        %527 = vadd.xlane.f32.xlu0 %v471
        %v528 = vpop.xlane.xlu0 %527
        %529 = vadd.xlane.f32.xlu0 %v472
        %v530 = vpop.xlane.xlu0 %529
        %531 = vadd.xlane.f32.xlu0 %v473
        %v532 = vpop.xlane.xlu0 %531
        %533 = vadd.xlane.f32.xlu0 %v474
        %v534 = vpop.xlane.xlu0 %533
        %535 = vadd.xlane.f32.xlu0 %v475
        %v536 = vpop.xlane.xlu0 %535
        %537 = vadd.xlane.f32.xlu0 %v476
        %v538 = vpop.xlane.xlu0 %537
        %539 = vadd.xlane.f32.xlu0 %v477
        %v540 = vpop.xlane.xlu0 %539
        %541 = vadd.xlane.f32.xlu0 %v478
        %v542 = vpop.xlane.xlu0 %541
        %543 = vadd.xlane.f32.xlu0 %v479
        %v544 = vpop.xlane.xlu0 %543
        %545 = vadd.xlane.f32.xlu0 %v480
        %v546 = vpop.xlane.xlu0 %545
        %547 = vadd.xlane.f32.xlu0 %v481
        %v548 = vpop.xlane.xlu0 %547
        %549 = vadd.xlane.f32.xlu0 %v482
        %v550 = vpop.xlane.xlu0 %549
        %551 = vadd.xlane.f32.xlu0 %v483
        %v552 = vpop.xlane.xlu0 %551
        %553 = vadd.xlane.f32.xlu0 %v484
        %v554 = vpop.xlane.xlu0 %553
        %555 = vadd.xlane.f32.xlu0 %v485
        %v556 = vpop.xlane.xlu0 %555
        %557 = vadd.xlane.f32.xlu0 %v486
        %v558 = vpop.xlane.xlu0 %557
        %559 = vadd.xlane.f32.xlu0 %v487
        %v560 = vpop.xlane.xlu0 %559
        %561 = vadd.xlane.f32.xlu0 %v488
        %v562 = vpop.xlane.xlu0 %561
        %563 = vadd.xlane.f32.xlu0 %v489
        %v564 = vpop.xlane.xlu0 %563
        %565 = vadd.xlane.f32.xlu0 %v490
        %v566 = vpop.xlane.xlu0 %565
        %567 = vadd.xlane.f32.xlu0 %v491
        %v568 = vpop.xlane.xlu0 %567
        %569 = vadd.xlane.f32.xlu0 %v492
        %v570 = vpop.xlane.xlu0 %569
        %571 = vadd.xlane.f32.xlu0 %v493
        %v572 = vpop.xlane.xlu0 %571
        %573 = vadd.xlane.f32.xlu0 %v494
        %v574 = vpop.xlane.xlu0 %573
        %575 = vadd.xlane.f32.xlu0 %v495
        %v576 = vpop.xlane.xlu0 %575
        %577 = vadd.xlane.f32.xlu0 %v496
        %v578 = vpop.xlane.xlu0 %577
        %579 = vadd.xlane.f32.xlu0 %v497
        %v580 = vpop.xlane.xlu0 %579
        %581 = vadd.xlane.f32.xlu0 %v498
        %v582 = vpop.xlane.xlu0 %581
        %583 = vadd.xlane.f32.xlu0 %v499
        %v584 = vpop.xlane.xlu0 %583
        %585 = vadd.xlane.f32.xlu0 %v500
        %v586 = vpop.xlane.xlu0 %585
        %587 = vadd.xlane.f32.xlu0 %v501
        %v588 = vpop.xlane.xlu0 %587
        %589 = vadd.xlane.f32.xlu0 %v502
        %v590 = vpop.xlane.xlu0 %589
        %591 = vadd.xlane.f32.xlu0 %v503
        %v592 = vpop.xlane.xlu0 %591
        %593 = vadd.xlane.f32.xlu0 %v504
        %v594 = vpop.xlane.xlu0 %593
        %595 = vadd.xlane.f32.xlu0 %v505
        %v596 = vpop.xlane.xlu0 %595
        %597 = vadd.xlane.f32.xlu0 %v506
        %v598 = vpop.xlane.xlu0 %597
        %599 = vadd.xlane.f32.xlu0 %v507
        %v600 = vpop.xlane.xlu0 %599
        %601 = vadd.xlane.f32.xlu0 %v508
        %v602 = vpop.xlane.xlu0 %601
        %603 = vadd.xlane.f32.xlu0 %v509
        %v604 = vpop.xlane.xlu0 %603
        %605 = vadd.xlane.f32.xlu0 %v510
        %v606 = vpop.xlane.xlu0 %605
        %607 = vadd.xlane.f32.xlu0 %v511
        %v608 = vpop.xlane.xlu0 %607
        %609 = vadd.xlane.f32.xlu0 %v512
        %v610 = vpop.xlane.xlu0 %609
        %v611 = vmul.f32 %v514, %v365
        %v612 = vmul.f32 %v516, %v365
        %v613 = vmul.f32 %v518, %v365
        %v614 = vmul.f32 %v520, %v365
        %v615 = vmul.f32 %v522, %v365
        %v616 = vmul.f32 %v524, %v365
        %v617 = vmul.f32 %v526, %v365
        %v618 = vmul.f32 %v528, %v365
        %v619 = vmul.f32 %v530, %v365
        %v620 = vmul.f32 %v532, %v365
        %v621 = vmul.f32 %v534, %v365
        %v622 = vmul.f32 %v536, %v365
        %v623 = vmul.f32 %v538, %v365
        %v624 = vmul.f32 %v540, %v365
        %v625 = vmul.f32 %v542, %v365
        %v626 = vmul.f32 %v544, %v365
        %v627 = vmul.f32 %v546, %v365
        %v628 = vmul.f32 %v548, %v365
        %v629 = vmul.f32 %v550, %v365
        %v630 = vmul.f32 %v552, %v365
        %v631 = vmul.f32 %v554, %v365
        %v632 = vmul.f32 %v556, %v365
        %v633 = vmul.f32 %v558, %v365
        %v634 = vmul.f32 %v560, %v365
        %v635 = vmul.f32 %v562, %v365
        %v636 = vmul.f32 %v564, %v365
        %v637 = vmul.f32 %v566, %v365
        %v638 = vmul.f32 %v568, %v365
        %v639 = vmul.f32 %v570, %v365
        %v640 = vmul.f32 %v572, %v365
        %v641 = vmul.f32 %v574, %v365
        %v642 = vmul.f32 %v576, %v365
        %v643 = vmul.f32 %v578, %v365
        %v644 = vmul.f32 %v580, %v365
        %v645 = vmul.f32 %v582, %v365
        %v646 = vmul.f32 %v584, %v365
        %v647 = vmul.f32 %v586, %v365
        %v648 = vmul.f32 %v588, %v365
        %v649 = vmul.f32 %v590, %v365
        %v650 = vmul.f32 %v592, %v365
        %v651 = vmul.f32 %v594, %v365
        %v652 = vmul.f32 %v596, %v365
        %v653 = vmul.f32 %v598, %v365
        %v654 = vmul.f32 %v600, %v365
        %v655 = vmul.f32 %v602, %v365
        %v656 = vmul.f32 %v604, %v365
        %v657 = vmul.f32 %v606, %v365
        %v658 = vmul.f32 %v608, %v365
        %v659 = vmul.f32 %v610, %v365
        %v660 = vadd.f32 %v611, 1e-05
        %v661 = vadd.f32 %v612, 1e-05
        %v662 = vadd.f32 %v613, 1e-05
        %v663 = vadd.f32 %v614, 1e-05
        %v664 = vadd.f32 %v615, 1e-05
        %v665 = vadd.f32 %v616, 1e-05
        %v666 = vadd.f32 %v617, 1e-05
        %v667 = vadd.f32 %v618, 1e-05
        %v668 = vadd.f32 %v619, 1e-05
        %v669 = vadd.f32 %v620, 1e-05
        %v670 = vadd.f32 %v621, 1e-05
        %v671 = vadd.f32 %v622, 1e-05
        %v672 = vadd.f32 %v623, 1e-05
        %v673 = vadd.f32 %v624, 1e-05
        %v674 = vadd.f32 %v625, 1e-05
        %v675 = vadd.f32 %v626, 1e-05
        %v676 = vadd.f32 %v627, 1e-05
        %v677 = vadd.f32 %v628, 1e-05
        %v678 = vadd.f32 %v629, 1e-05
        %v679 = vadd.f32 %v630, 1e-05
        %v680 = vadd.f32 %v631, 1e-05
        %v681 = vadd.f32 %v632, 1e-05
        %v682 = vadd.f32 %v633, 1e-05
        %v683 = vadd.f32 %v634, 1e-05
        %v684 = vadd.f32 %v635, 1e-05
        %v685 = vadd.f32 %v636, 1e-05
        %v686 = vadd.f32 %v637, 1e-05
        %v687 = vadd.f32 %v638, 1e-05
        %v688 = vadd.f32 %v639, 1e-05
        %v689 = vadd.f32 %v640, 1e-05
        %v690 = vadd.f32 %v641, 1e-05
        %v691 = vadd.f32 %v642, 1e-05
        %v692 = vadd.f32 %v643, 1e-05
        %v693 = vadd.f32 %v644, 1e-05
        %v694 = vadd.f32 %v645, 1e-05
        %v695 = vadd.f32 %v646, 1e-05
        %v696 = vadd.f32 %v647, 1e-05
        %v697 = vadd.f32 %v648, 1e-05
        %v698 = vadd.f32 %v649, 1e-05
        %v699 = vadd.f32 %v650, 1e-05
        %v700 = vadd.f32 %v651, 1e-05
        %v701 = vadd.f32 %v652, 1e-05
        %v702 = vadd.f32 %v653, 1e-05
        %v703 = vadd.f32 %v654, 1e-05
        %v704 = vadd.f32 %v655, 1e-05
        %v705 = vadd.f32 %v656, 1e-05
        %v706 = vadd.f32 %v657, 1e-05
        %v707 = vadd.f32 %v658, 1e-05
        %v708 = vadd.f32 %v659, 1e-05
        %v709 = vrsqrt.pop %v660
        %v710 = vrsqrt.pop %v661
        %v711 = vrsqrt.pop %v662
        %v712 = vrsqrt.pop %v663
        %v713 = vrsqrt.pop %v664
        %v714 = vrsqrt.pop %v665
        %v715 = vrsqrt.pop %v666
        %v716 = vrsqrt.pop %v667
        %v717 = vrsqrt.pop %v668
        %v718 = vrsqrt.pop %v669
        %v719 = vrsqrt.pop %v670
        %v720 = vrsqrt.pop %v671
        %v721 = vrsqrt.pop %v672
        %v722 = vrsqrt.pop %v673
        %v723 = vrsqrt.pop %v674
        %v724 = vrsqrt.pop %v675
        %v725 = vrsqrt.pop %v676
        %v726 = vrsqrt.pop %v677
        %v727 = vrsqrt.pop %v678
        %v728 = vrsqrt.pop %v679
        %v729 = vrsqrt.pop %v680
        %v730 = vrsqrt.pop %v681
        %v731 = vrsqrt.pop %v682
        %v732 = vrsqrt.pop %v683
        %v733 = vrsqrt.pop %v684
        %v734 = vrsqrt.pop %v685
        %v735 = vrsqrt.pop %v686
        %v736 = vrsqrt.pop %v687
        %v737 = vrsqrt.pop %v688
        %v738 = vrsqrt.pop %v689
        %v739 = vrsqrt.pop %v690
        %v740 = vrsqrt.pop %v691
        %v741 = vrsqrt.pop %v692
        %v742 = vrsqrt.pop %v693
        %v743 = vrsqrt.pop %v694
        %v744 = vrsqrt.pop %v695
        %v745 = vrsqrt.pop %v696
        %v746 = vrsqrt.pop %v697
        %v747 = vrsqrt.pop %v698
        %v748 = vrsqrt.pop %v699
        %v749 = vrsqrt.pop %v700
        %v750 = vrsqrt.pop %v701
        %v751 = vrsqrt.pop %v702
        %v752 = vrsqrt.pop %v703
        %v753 = vrsqrt.pop %v704
        %v754 = vrsqrt.pop %v705
        %v755 = vrsqrt.pop %v706
        %v756 = vrsqrt.pop %v707
        %v757 = vrsqrt.pop %v708
        %v758 = vmul.f32 %v415, %v709
        %v759 = vmul.f32 %v416, %v710
        %v760 = vmul.f32 %v417, %v711
        %v761 = vmul.f32 %v418, %v712
        %v762 = vmul.f32 %v419, %v713
        %v763 = vmul.f32 %v420, %v714
        %v764 = vmul.f32 %v421, %v715
        %v765 = vmul.f32 %v422, %v716
        %v766 = vmul.f32 %v423, %v717
        %v767 = vmul.f32 %v424, %v718
        %v768 = vmul.f32 %v425, %v719
        %v769 = vmul.f32 %v426, %v720
        %v770 = vmul.f32 %v427, %v721
        %v771 = vmul.f32 %v428, %v722
        %v772 = vmul.f32 %v429, %v723
        %v773 = vmul.f32 %v430, %v724
        %v774 = vmul.f32 %v431, %v725
        %v775 = vmul.f32 %v432, %v726
        %v776 = vmul.f32 %v433, %v727
        %v777 = vmul.f32 %v434, %v728
        %v778 = vmul.f32 %v435, %v729
        %v779 = vmul.f32 %v436, %v730
        %v780 = vmul.f32 %v437, %v731
        %v781 = vmul.f32 %v438, %v732
        %v782 = vmul.f32 %v439, %v733
        %v783 = vmul.f32 %v440, %v734
        %v784 = vmul.f32 %v441, %v735
        %v785 = vmul.f32 %v442, %v736
        %v786 = vmul.f32 %v443, %v737
        %v787 = vmul.f32 %v444, %v738
        %v788 = vmul.f32 %v445, %v739
        %v789 = vmul.f32 %v446, %v740
        %v790 = vmul.f32 %v447, %v741
        %v791 = vmul.f32 %v448, %v742
        %v792 = vmul.f32 %v449, %v743
        %v793 = vmul.f32 %v450, %v744
        %v794 = vmul.f32 %v451, %v745
        %v795 = vmul.f32 %v452, %v746
        %v796 = vmul.f32 %v453, %v747
        %v797 = vmul.f32 %v454, %v748
        %v798 = vmul.f32 %v455, %v749
        %v799 = vmul.f32 %v456, %v750
        %v800 = vmul.f32 %v457, %v751
        %v801 = vmul.f32 %v458, %v752
        %v802 = vmul.f32 %v459, %v753
        %v803 = vmul.f32 %v460, %v754
        %v804 = vmul.f32 %v461, %v755
        %v805 = vmul.f32 %v462, %v756
        %v806 = vmul.f32 %v463, %v757
        %v807 = vld [vmem:[#allocation5] sm:$0xff]
        %v808 = vld [vmem:[#allocation5 + $0x8] sm:$0xff]
        %v809 = vld [vmem:[#allocation5 + $0x10] sm:$0xff]
        %v810 = vld [vmem:[#allocation5 + $0x18] sm:$0xff]
        %v811 = vld [vmem:[#allocation5 + $0x20] sm:$0xff]
        %v812 = vld [vmem:[#allocation5 + $0x28] sm:$0xff]
        %v813 = vld [vmem:[#allocation5 + $0x30] sm:$0xff]
        %v814 = vld [vmem:[#allocation5 + $0x38] sm:$0xff]
        %v815 = vld [vmem:[#allocation5 + $0x40] sm:$0xff]
        %v816 = vld [vmem:[#allocation5 + $0x48] sm:$0xff]
        %v817 = vld [vmem:[#allocation5 + $0x50] sm:$0xff]
        %v818 = vld [vmem:[#allocation5 + $0x58] sm:$0xff]
        %v819 = vld [vmem:[#allocation5 + $0x60] sm:$0xff]
        %v820 = vld [vmem:[#allocation5 + $0x68] sm:$0xff]
        %v821 = vld [vmem:[#allocation5 + $0x70] sm:$0xff]
        %v822 = vld [vmem:[#allocation5 + $0x78] sm:$0xff]
        %v823 = vld [vmem:[#allocation5 + $0x80] sm:$0xff]
        %v824 = vld [vmem:[#allocation5 + $0x88] sm:$0xff]
        %v825 = vld [vmem:[#allocation5 + $0x90] sm:$0xff]
        %v826 = vld [vmem:[#allocation5 + $0x98] sm:$0xff]
        %v827 = vld [vmem:[#allocation5 + $0xa0] sm:$0xff]
        %v828 = vld [vmem:[#allocation5 + $0xa8] sm:$0xff]
        %v829 = vld [vmem:[#allocation5 + $0xb0] sm:$0xff]
        %v830 = vld [vmem:[#allocation5 + $0xb8] sm:$0xff]
        %v831 = vld [vmem:[#allocation5 + $0xc0] sm:$0xff]
        %v832 = vld [vmem:[#allocation5 + $0xc8] sm:$0xff]
        %v833 = vld [vmem:[#allocation5 + $0xd0] sm:$0xff]
        %v834 = vld [vmem:[#allocation5 + $0xd8] sm:$0xff]
        %v835 = vld [vmem:[#allocation5 + $0xe0] sm:$0xff]
        %v836 = vld [vmem:[#allocation5 + $0xe8] sm:$0xff]
        %v837 = vld [vmem:[#allocation5 + $0xf0] sm:$0xff]
        %v838 = vld [vmem:[#allocation5 + $0xf8] sm:$0xff]
        %v839 = vld [vmem:[#allocation5 + $0x100] sm:$0xff]
        %v840 = vld [vmem:[#allocation5 + $0x108] sm:$0xff]
        %v841 = vld [vmem:[#allocation5 + $0x110] sm:$0xff]
        %v842 = vld [vmem:[#allocation5 + $0x118] sm:$0xff]
        %v843 = vld [vmem:[#allocation5 + $0x120] sm:$0xff]
        %v844 = vld [vmem:[#allocation5 + $0x128] sm:$0xff]
        %v845 = vld [vmem:[#allocation5 + $0x130] sm:$0xff]
        %v846 = vld [vmem:[#allocation5 + $0x138] sm:$0xff]
        %v847 = vld [vmem:[#allocation5 + $0x140] sm:$0xff]
        %v848 = vld [vmem:[#allocation5 + $0x148] sm:$0xff]
        %v849 = vld [vmem:[#allocation5 + $0x150] sm:$0xff]
        %v850 = vld [vmem:[#allocation5 + $0x158] sm:$0xff]
        %v851 = vld [vmem:[#allocation5 + $0x160] sm:$0xff]
        %v852 = vld [vmem:[#allocation5 + $0x168] sm:$0xff]
        %v853 = vld [vmem:[#allocation5 + $0x170] sm:$0xff]
        %v854 = vld [vmem:[#allocation5 + $0x178] sm:$0xff]
        %v855 = vld [vmem:[#allocation5 + $0x180] sm:$0xff]
        %v856 = vld [vmem:[#allocation5 + $0x188] sm:$0xff]
        %v857 = vld [vmem:[#allocation5 + $0x190] sm:$0xff]
        %v858 = vld [vmem:[#allocation5 + $0x198] sm:$0xff]
        %v859 = vld [vmem:[#allocation5 + $0x1a0] sm:$0xff]
        %v860 = vld [vmem:[#allocation5 + $0x1a8] sm:$0xff]
        %v861 = vld [vmem:[#allocation5 + $0x1b0] sm:$0xff]
        %v862 = vld [vmem:[#allocation5 + $0x1b8] sm:$0xff]
        %v863 = vld [vmem:[#allocation5 + $0x1c0] sm:$0xff]
        %v864 = vld [vmem:[#allocation5 + $0x1c8] sm:$0xff]
        %v865 = vld [vmem:[#allocation5 + $0x1d0] sm:$0xff]
        %v866 = vld [vmem:[#allocation5 + $0x1d8] sm:$0xff]
        %v867 = vld [vmem:[#allocation5 + $0x1e0] sm:$0xff]
        %v868 = vld [vmem:[#allocation5 + $0x1e8] sm:$0xff]
        %v869 = vld [vmem:[#allocation5 + $0x1f0] sm:$0xff]
        %v870 = vld [vmem:[#allocation5 + $0x1f8] sm:$0xff]
        %v871 = vld [vmem:[#allocation7] sm:$0xf]
        %v873 = vlaneseq
        %v874 = vshrl.u32 %v873, 7
        %v875 = vsub.s32 0, %v874
        %v876 = vrot.slane %v871, %v875
        %v877 = vlaneseq
        %v878 = vshrl.u32 %v877, 7
        %v879 = vsub.s32 1, %v878
        %v880 = vrot.slane %v871, %v879
        %v881 = vlaneseq
        %v882 = vshrl.u32 %v881, 7
        %v883 = vsub.s32 2, %v882
        %v884 = vrot.slane %v871, %v883
        %v885 = vlaneseq
        %v886 = vshrl.u32 %v885, 7
        %v887 = vsub.s32 3, %v886
        %v888 = vrot.slane %v871, %v887
        %893 = vmatprep.subr.mxu0 %v808
        %894 = vmatpush1.msra.mxu0 %v807
        %895 = vmatprep.subr.mxu0 %v812
        %896 = vmatpush1.msra.mxu0 %v811
        %897 = vmatprep.subr.mxu0 %v816
        %898 = vmatpush1.msra.mxu0 %v815
        %899 = vmatprep.subr.mxu0 %v820
        %900 = vmatpush1.msra.mxu0 %v819
        %901 = vmatprep.subr.mxu0 %v824
        %902 = vmatpush1.msra.mxu0 %v823
        %903 = vmatprep.subr.mxu0 %v828
        %904 = vmatpush1.msra.mxu0 %v827
        %905 = vmatprep.subr.mxu0 %v832
        %906 = vmatpush1.msra.mxu0 %v831
        %907 = vmatprep.subr.mxu0 %v836
        %908 = vmatpush1.msra.mxu0 %v835
        %909 = vmatprep.subr.mxu0 %v840
        %910 = vmatpush1.msra.mxu0 %v839
        %911 = vmatprep.subr.mxu0 %v844
        %912 = vmatpush1.msra.mxu0 %v843
        %913 = vmatprep.subr.mxu0 %v848
        %914 = vmatpush1.msra.mxu0 %v847
        %915 = vmatprep.subr.mxu0 %v852
        %916 = vmatpush1.msra.mxu0 %v851
        %917 = vmatprep.subr.mxu0 %v856
        %918 = vmatpush1.msra.mxu0 %v855
        %919 = vmatprep.subr.mxu0 %v860
        %920 = vmatpush1.msra.mxu0 %v859
        %921 = vmatprep.subr.mxu0 %v864
        %922 = vmatpush1.msra.mxu0 %v863
        %923 = vmatprep.subr.mxu0 %v868
        %924 = vmatpush1.msra.mxu0 %v867
        %925 = vmatprep.subr.mxu0 0.0
        %926 = vmatpush1.msra.mxu0 0.0
        %927 = vmatprep.subr.mxu0 0.0
        %928 = vmatpush1.msra.mxu0 0.0
        %929 = vmatprep.subr.mxu0 0.0
        %930 = vmatpush1.msra.mxu0 0.0
        %931 = vmatprep.subr.mxu0 0.0
        %932 = vmatpush1.msra.mxu0 0.0
        %933 = vmatprep.subr.mxu0 0.0
        %934 = vmatpush1.msra.mxu0 0.0
        %935 = vmatprep.subr.mxu0 0.0
        %936 = vmatpush1.msra.mxu0 0.0
        %937 = vmatprep.subr.mxu0 0.0
        %938 = vmatpush1.msra.mxu0 0.0
        %939 = vmatprep.subr.mxu0 0.0
        %940 = vmatpush1.msra.mxu0 0.0
        %941 = vmatprep.subr.mxu0 0.0
        %942 = vmatpush1.msra.mxu0 0.0
        %943 = vmatprep.subr.mxu0 0.0
        %944 = vmatpush1.msra.mxu0 0.0
        %945 = vmatprep.subr.mxu0 0.0
        %946 = vmatpush1.msra.mxu0 0.0
        %947 = vmatprep.subr.mxu0 0.0
        %948 = vmatpush1.msra.mxu0 0.0
        %949 = vmatprep.subr.mxu0 0.0
        %950 = vmatpush1.msra.mxu0 0.0
        %951 = vmatprep.subr.mxu0 0.0
        %952 = vmatpush1.msra.mxu0 0.0
        %953 = vmatprep.subr.mxu0 0.0
        %954 = vmatpush1.msra.mxu0 0.0
        %955 = vmatprep.subr.mxu0 0.0
        %956 = vmatpush1.msra.mxu0 0.0
        %957 = vmatprep.mubr.f32.mxu0 0.0
        %958 = vmatmul.mubr.f32.gmra.mrb[0].mxu0 %v758
        %v959 = vpop.f32.mrb[0].mxu0
        %v960 = vadd.f32 %v876, %v959
        %v961 = vpop.f32.mrb[0].mxu0
        %v962 = vadd.f32 %v880, %v961
        %963 = vmatprep.mubr.f32.mxu0 0.0
        %964 = vmatmul.mubr.f32.gmra.mrb[0].mxu0 %v759
        %v965 = vpop.f32.mrb[0].mxu0
        %v966 = vadd.f32 %v876, %v965
        %v967 = vpop.f32.mrb[0].mxu0
        %v968 = vadd.f32 %v880, %v967
        %969 = vmatprep.mubr.f32.mxu0 0.0
        %970 = vmatmul.mubr.f32.gmra.mrb[0].mxu0 %v760
        %v971 = vpop.f32.mrb[0].mxu0
        %v972 = vadd.f32 %v876, %v971
        %v973 = vpop.f32.mrb[0].mxu0
        %v974 = vadd.f32 %v880, %v973
        %975 = vmatprep.mubr.f32.mxu0 0.0
        %976 = vmatmul.mubr.f32.gmra.mrb[0].mxu0 %v761
        %v977 = vpop.f32.mrb[0].mxu0
        %v978 = vadd.f32 %v876, %v977
        %v979 = vpop.f32.mrb[0].mxu0
        %v980 = vadd.f32 %v880, %v979
        %981 = vmatprep.mubr.f32.mxu0 0.0
        %982 = vmatmul.mubr.f32.gmra.mrb[0].mxu0 %v762
        %v983 = vpop.f32.mrb[0].mxu0
        %v984 = vadd.f32 %v876, %v983
        %v985 = vpop.f32.mrb[0].mxu0
        %v986 = vadd.f32 %v880, %v985
        %987 = vmatprep.mubr.f32.mxu0 0.0
        %988 = vmatmul.mubr.f32.gmra.mrb[0].mxu0 %v763
        %v989 = vpop.f32.mrb[0].mxu0
        %v990 = vadd.f32 %v876, %v989
        %v991 = vpop.f32.mrb[0].mxu0
        %v992 = vadd.f32 %v880, %v991
        %993 = vmatprep.mubr.f32.mxu0 0.0
        %994 = vmatmul.mubr.f32.gmra.mrb[0].mxu0 %v764
        %v995 = vpop.f32.mrb[0].mxu0
        %v996 = vadd.f32 %v876, %v995
        %v997 = vpop.f32.mrb[0].mxu0
        %v998 = vadd.f32 %v880, %v997
        %999 = vmatprep.mubr.f32.mxu0 0.0
        %1000 = vmatmul.mubr.f32.gmra.mrb[0].mxu0 %v765
        %v1001 = vpop.f32.mrb[0].mxu0
        %v1002 = vadd.f32 %v876, %v1001
        %v1003 = vpop.f32.mrb[0].mxu0
        %v1004 = vadd.f32 %v880, %v1003
        %1005 = vmatprep.mubr.f32.mxu0 0.0
        %1006 = vmatmul.mubr.f32.gmra.mrb[0].mxu0 %v766
        %v1007 = vpop.f32.mrb[0].mxu0
        %v1008 = vadd.f32 %v876, %v1007
        %v1009 = vpop.f32.mrb[0].mxu0
        %v1010 = vadd.f32 %v880, %v1009
        %1011 = vmatprep.mubr.f32.mxu0 0.0
        %1012 = vmatmul.mubr.f32.gmra.mrb[0].mxu0 %v767
        %v1013 = vpop.f32.mrb[0].mxu0
        %v1014 = vadd.f32 %v876, %v1013
        %v1015 = vpop.f32.mrb[0].mxu0
        %v1016 = vadd.f32 %v880, %v1015
        %1017 = vmatprep.mubr.f32.mxu0 0.0
        %1018 = vmatmul.mubr.f32.gmra.mrb[0].mxu0 %v768
        %v1019 = vpop.f32.mrb[0].mxu0
        %v1020 = vadd.f32 %v876, %v1019
        %v1021 = vpop.f32.mrb[0].mxu0
        %v1022 = vadd.f32 %v880, %v1021
        %1023 = vmatprep.mubr.f32.mxu0 0.0
        %1024 = vmatmul.mubr.f32.gmra.mrb[0].mxu0 %v769
        %v1025 = vpop.f32.mrb[0].mxu0
        %v1026 = vadd.f32 %v876, %v1025
        %v1027 = vpop.f32.mrb[0].mxu0
        %v1028 = vadd.f32 %v880, %v1027
        %1029 = vmatprep.mubr.f32.mxu0 0.0
        %1030 = vmatmul.mubr.f32.gmra.mrb[0].mxu0 %v770
        %v1031 = vpop.f32.mrb[0].mxu0
        %v1032 = vadd.f32 %v876, %v1031
        %v1033 = vpop.f32.mrb[0].mxu0
        %v1034 = vadd.f32 %v880, %v1033
        %1035 = vmatprep.mubr.f32.mxu0 0.0
        %1036 = vmatmul.mubr.f32.gmra.mrb[0].mxu0 %v771
        %v1037 = vpop.f32.mrb[0].mxu0
        %v1038 = vadd.f32 %v876, %v1037
        %v1039 = vpop.f32.mrb[0].mxu0
        %v1040 = vadd.f32 %v880, %v1039
        %1041 = vmatprep.mubr.f32.mxu0 0.0
        %1042 = vmatmul.mubr.f32.gmra.mrb[0].mxu0 %v772
        %v1043 = vpop.f32.mrb[0].mxu0
        %v1044 = vadd.f32 %v876, %v1043
        %v1045 = vpop.f32.mrb[0].mxu0
        %v1046 = vadd.f32 %v880, %v1045
        %1047 = vmatprep.mubr.f32.mxu0 0.0
        %1048 = vmatmul.mubr.f32.gmra.mrb[0].mxu0 %v773
        %v1049 = vpop.f32.mrb[0].mxu0
        %v1050 = vadd.f32 %v876, %v1049
        %v1051 = vpop.f32.mrb[0].mxu0
        %v1052 = vadd.f32 %v880, %v1051
        %1053 = vmatprep.mubr.f32.mxu0 0.0
        %1054 = vmatmul.mubr.f32.gmra.mrb[0].mxu0 %v774
        %v1055 = vpop.f32.mrb[0].mxu0
        %v1056 = vadd.f32 %v876, %v1055
        %v1057 = vpop.f32.mrb[0].mxu0
        %v1058 = vadd.f32 %v880, %v1057
        %1059 = vmatprep.mubr.f32.mxu0 0.0
        %1060 = vmatmul.mubr.f32.gmra.mrb[0].mxu0 %v775
        %v1061 = vpop.f32.mrb[0].mxu0
        %v1062 = vadd.f32 %v876, %v1061
        %v1063 = vpop.f32.mrb[0].mxu0
        %v1064 = vadd.f32 %v880, %v1063
        %1065 = vmatprep.mubr.f32.mxu0 0.0
        %1066 = vmatmul.mubr.f32.gmra.mrb[0].mxu0 %v776
        %v1067 = vpop.f32.mrb[0].mxu0
        %v1068 = vadd.f32 %v876, %v1067
        %v1069 = vpop.f32.mrb[0].mxu0
        %v1070 = vadd.f32 %v880, %v1069
        %1071 = vmatprep.mubr.f32.mxu0 0.0
        %1072 = vmatmul.mubr.f32.gmra.mrb[0].mxu0 %v777
        %v1073 = vpop.f32.mrb[0].mxu0
        %v1074 = vadd.f32 %v876, %v1073
        %v1075 = vpop.f32.mrb[0].mxu0
        %v1076 = vadd.f32 %v880, %v1075
        %1077 = vmatprep.mubr.f32.mxu0 0.0
        %1078 = vmatmul.mubr.f32.gmra.mrb[0].mxu0 %v778
        %v1079 = vpop.f32.mrb[0].mxu0
        %v1080 = vadd.f32 %v876, %v1079
        %v1081 = vpop.f32.mrb[0].mxu0
        %v1082 = vadd.f32 %v880, %v1081
        %1083 = vmatprep.mubr.f32.mxu0 0.0
        %1084 = vmatmul.mubr.f32.gmra.mrb[0].mxu0 %v779
        %v1085 = vpop.f32.mrb[0].mxu0
        %v1086 = vadd.f32 %v876, %v1085
        %v1087 = vpop.f32.mrb[0].mxu0
        %v1088 = vadd.f32 %v880, %v1087
        %1089 = vmatprep.mubr.f32.mxu0 0.0
        %1090 = vmatmul.mubr.f32.gmra.mrb[0].mxu0 %v780
        %v1091 = vpop.f32.mrb[0].mxu0
        %v1092 = vadd.f32 %v876, %v1091
        %v1093 = vpop.f32.mrb[0].mxu0
        %v1094 = vadd.f32 %v880, %v1093
        %1095 = vmatprep.mubr.f32.mxu0 0.0
        %1096 = vmatmul.mubr.f32.gmra.mrb[0].mxu0 %v781
        %v1097 = vpop.f32.mrb[0].mxu0
        %v1098 = vadd.f32 %v876, %v1097
        %v1099 = vpop.f32.mrb[0].mxu0
        %v1100 = vadd.f32 %v880, %v1099
        %1101 = vmatprep.mubr.f32.mxu0 0.0
        %1102 = vmatmul.mubr.f32.gmra.mrb[0].mxu0 %v782
        %v1103 = vpop.f32.mrb[0].mxu0
        %v1104 = vadd.f32 %v876, %v1103
        %v1105 = vpop.f32.mrb[0].mxu0
        %v1106 = vadd.f32 %v880, %v1105
        %1107 = vmatprep.mubr.f32.mxu0 0.0
        %1108 = vmatmul.mubr.f32.gmra.mrb[0].mxu0 %v783
        %v1109 = vpop.f32.mrb[0].mxu0
        %v1110 = vadd.f32 %v876, %v1109
        %v1111 = vpop.f32.mrb[0].mxu0
        %v1112 = vadd.f32 %v880, %v1111
        %1113 = vmatprep.mubr.f32.mxu0 0.0
        %1114 = vmatmul.mubr.f32.gmra.mrb[0].mxu0 %v784
        %v1115 = vpop.f32.mrb[0].mxu0
        %v1116 = vadd.f32 %v876, %v1115
        %v1117 = vpop.f32.mrb[0].mxu0
        %v1118 = vadd.f32 %v880, %v1117
        %1119 = vmatprep.mubr.f32.mxu0 0.0
        %1120 = vmatmul.mubr.f32.gmra.mrb[0].mxu0 %v785
        %v1121 = vpop.f32.mrb[0].mxu0
        %v1122 = vadd.f32 %v876, %v1121
        %v1123 = vpop.f32.mrb[0].mxu0
        %v1124 = vadd.f32 %v880, %v1123
        %1125 = vmatprep.mubr.f32.mxu0 0.0
        %1126 = vmatmul.mubr.f32.gmra.mrb[0].mxu0 %v786
        %v1127 = vpop.f32.mrb[0].mxu0
        %v1128 = vadd.f32 %v876, %v1127
        %v1129 = vpop.f32.mrb[0].mxu0
        %v1130 = vadd.f32 %v880, %v1129
        %1131 = vmatprep.mubr.f32.mxu0 0.0
        %1132 = vmatmul.mubr.f32.gmra.mrb[0].mxu0 %v787
        %v1133 = vpop.f32.mrb[0].mxu0
        %v1134 = vadd.f32 %v876, %v1133
        %v1135 = vpop.f32.mrb[0].mxu0
        %v1136 = vadd.f32 %v880, %v1135
        %1137 = vmatprep.mubr.f32.mxu0 0.0
        %1138 = vmatmul.mubr.f32.gmra.mrb[0].mxu0 %v788
        %v1139 = vpop.f32.mrb[0].mxu0
        %v1140 = vadd.f32 %v876, %v1139
        %v1141 = vpop.f32.mrb[0].mxu0
        %v1142 = vadd.f32 %v880, %v1141
        %1143 = vmatprep.mubr.f32.mxu0 0.0
        %1144 = vmatmul.mubr.f32.gmra.mrb[0].mxu0 %v789
        %v1145 = vpop.f32.mrb[0].mxu0
        %v1146 = vadd.f32 %v876, %v1145
        %v1147 = vpop.f32.mrb[0].mxu0
        %v1148 = vadd.f32 %v880, %v1147
        %1149 = vmatprep.mubr.f32.mxu0 0.0
        %1150 = vmatmul.mubr.f32.gmra.mrb[0].mxu0 %v790
        %v1151 = vpop.f32.mrb[0].mxu0
        %v1152 = vadd.f32 %v876, %v1151
        %v1153 = vpop.f32.mrb[0].mxu0
        %v1154 = vadd.f32 %v880, %v1153
        %1155 = vmatprep.mubr.f32.mxu0 0.0
        %1156 = vmatmul.mubr.f32.gmra.mrb[0].mxu0 %v791
        %v1157 = vpop.f32.mrb[0].mxu0
        %v1158 = vadd.f32 %v876, %v1157
        %v1159 = vpop.f32.mrb[0].mxu0
        %v1160 = vadd.f32 %v880, %v1159
        %1161 = vmatprep.mubr.f32.mxu0 0.0
        %1162 = vmatmul.mubr.f32.gmra.mrb[0].mxu0 %v792
        %v1163 = vpop.f32.mrb[0].mxu0
        %v1164 = vadd.f32 %v876, %v1163
        %v1165 = vpop.f32.mrb[0].mxu0
        %v1166 = vadd.f32 %v880, %v1165
        %1167 = vmatprep.mubr.f32.mxu0 0.0
        %1168 = vmatmul.mubr.f32.gmra.mrb[0].mxu0 %v793
        %v1169 = vpop.f32.mrb[0].mxu0
        %v1170 = vadd.f32 %v876, %v1169
        %v1171 = vpop.f32.mrb[0].mxu0
        %v1172 = vadd.f32 %v880, %v1171
        %1173 = vmatprep.mubr.f32.mxu0 0.0
        %1174 = vmatmul.mubr.f32.gmra.mrb[0].mxu0 %v794
        %v1175 = vpop.f32.mrb[0].mxu0
        %v1176 = vadd.f32 %v876, %v1175
        %v1177 = vpop.f32.mrb[0].mxu0
        %v1178 = vadd.f32 %v880, %v1177
        %1179 = vmatprep.mubr.f32.mxu0 0.0
        %1180 = vmatmul.mubr.f32.gmra.mrb[0].mxu0 %v795
        %v1181 = vpop.f32.mrb[0].mxu0
        %v1182 = vadd.f32 %v876, %v1181
        %v1183 = vpop.f32.mrb[0].mxu0
        %v1184 = vadd.f32 %v880, %v1183
        %1185 = vmatprep.mubr.f32.mxu0 0.0
        %1186 = vmatmul.mubr.f32.gmra.mrb[0].mxu0 %v796
        %v1187 = vpop.f32.mrb[0].mxu0
        %v1188 = vadd.f32 %v876, %v1187
        %v1189 = vpop.f32.mrb[0].mxu0
        %v1190 = vadd.f32 %v880, %v1189
        %1191 = vmatprep.mubr.f32.mxu0 0.0
        %1192 = vmatmul.mubr.f32.gmra.mrb[0].mxu0 %v797
        %v1193 = vpop.f32.mrb[0].mxu0
        %v1194 = vadd.f32 %v876, %v1193
        %v1195 = vpop.f32.mrb[0].mxu0
        %v1196 = vadd.f32 %v880, %v1195
        %1197 = vmatprep.mubr.f32.mxu0 0.0
        %1198 = vmatmul.mubr.f32.gmra.mrb[0].mxu0 %v798
        %v1199 = vpop.f32.mrb[0].mxu0
        %v1200 = vadd.f32 %v876, %v1199
        %v1201 = vpop.f32.mrb[0].mxu0
        %v1202 = vadd.f32 %v880, %v1201
        %1203 = vmatprep.mubr.f32.mxu0 0.0
        %1204 = vmatmul.mubr.f32.gmra.mrb[0].mxu0 %v799
        %v1205 = vpop.f32.mrb[0].mxu0
        %v1206 = vadd.f32 %v876, %v1205
        %v1207 = vpop.f32.mrb[0].mxu0
        %v1208 = vadd.f32 %v880, %v1207
        %1209 = vmatprep.mubr.f32.mxu0 0.0
        %1210 = vmatmul.mubr.f32.gmra.mrb[0].mxu0 %v800
        %v1211 = vpop.f32.mrb[0].mxu0
        %v1212 = vadd.f32 %v876, %v1211
        %v1213 = vpop.f32.mrb[0].mxu0
        %v1214 = vadd.f32 %v880, %v1213
        %1215 = vmatprep.mubr.f32.mxu0 0.0
        %1216 = vmatmul.mubr.f32.gmra.mrb[0].mxu0 %v801
        %v1217 = vpop.f32.mrb[0].mxu0
        %v1218 = vadd.f32 %v876, %v1217
        %v1219 = vpop.f32.mrb[0].mxu0
        %v1220 = vadd.f32 %v880, %v1219
        %1221 = vmatprep.mubr.f32.mxu0 0.0
        %1222 = vmatmul.mubr.f32.gmra.mrb[0].mxu0 %v802
        %v1223 = vpop.f32.mrb[0].mxu0
        %v1224 = vadd.f32 %v876, %v1223
        %v1225 = vpop.f32.mrb[0].mxu0
        %v1226 = vadd.f32 %v880, %v1225
        %1227 = vmatprep.mubr.f32.mxu0 0.0
        %1228 = vmatmul.mubr.f32.gmra.mrb[0].mxu0 %v803
        %v1229 = vpop.f32.mrb[0].mxu0
        %v1230 = vadd.f32 %v876, %v1229
        %v1231 = vpop.f32.mrb[0].mxu0
        %v1232 = vadd.f32 %v880, %v1231
        %1233 = vmatprep.mubr.f32.mxu0 0.0
        %1234 = vmatmul.mubr.f32.gmra.mrb[0].mxu0 %v804
        %v1235 = vpop.f32.mrb[0].mxu0
        %v1236 = vadd.f32 %v876, %v1235
        %v1237 = vpop.f32.mrb[0].mxu0
        %v1238 = vadd.f32 %v880, %v1237
        %1239 = vmatprep.mubr.f32.mxu0 0.0
        %1240 = vmatmul.mubr.f32.gmra.mrb[0].mxu0 %v805
        %v1241 = vpop.f32.mrb[0].mxu0
        %v1242 = vadd.f32 %v876, %v1241
        %v1243 = vpop.f32.mrb[0].mxu0
        %v1244 = vadd.f32 %v880, %v1243
        %1245 = vmatprep.mubr.f32.mxu0 0.0
        %1246 = vmatmul.mubr.f32.gmra.mrb[0].mxu0 %v806
        %v1247 = vpop.f32.mrb[0].mxu0
        %v1248 = vadd.f32 %v876, %v1247
        %v1249 = vpop.f32.mrb[0].mxu0
        %v1250 = vadd.f32 %v880, %v1249
        %1251 = vdwg.mxu0
        %1252 = vmatprep.subr.mxu0 %v810
        %1253 = vmatpush1.msra.mxu0 %v809
        %1254 = vmatprep.subr.mxu0 %v814
        %1255 = vmatpush1.msra.mxu0 %v813
        %1256 = vmatprep.subr.mxu0 %v818
        %1257 = vmatpush1.msra.mxu0 %v817
        %1258 = vmatprep.subr.mxu0 %v822
        %1259 = vmatpush1.msra.mxu0 %v821
        %1260 = vmatprep.subr.mxu0 %v826
        %1261 = vmatpush1.msra.mxu0 %v825
        %1262 = vmatprep.subr.mxu0 %v830
        %1263 = vmatpush1.msra.mxu0 %v829
        %1264 = vmatprep.subr.mxu0 %v834
        %1265 = vmatpush1.msra.mxu0 %v833
        %1266 = vmatprep.subr.mxu0 %v838
        %1267 = vmatpush1.msra.mxu0 %v837
        %1268 = vmatprep.subr.mxu0 %v842
        %1269 = vmatpush1.msra.mxu0 %v841
        %1270 = vmatprep.subr.mxu0 %v846
        %1271 = vmatpush1.msra.mxu0 %v845
        %1272 = vmatprep.subr.mxu0 %v850
        %1273 = vmatpush1.msra.mxu0 %v849
        %1274 = vmatprep.subr.mxu0 %v854
        %1275 = vmatpush1.msra.mxu0 %v853
        %1276 = vmatprep.subr.mxu0 %v858
        %1277 = vmatpush1.msra.mxu0 %v857
        %1278 = vmatprep.subr.mxu0 %v862
        %1279 = vmatpush1.msra.mxu0 %v861
        %1280 = vmatprep.subr.mxu0 %v866
        %1281 = vmatpush1.msra.mxu0 %v865
        %1282 = vmatprep.subr.mxu0 %v870
        %1283 = vmatpush1.msra.mxu0 %v869
        %1284 = vmatprep.subr.mxu0 0.0
        %1285 = vmatpush1.msra.mxu0 0.0
        %1286 = vmatprep.subr.mxu0 0.0
        %1287 = vmatpush1.msra.mxu0 0.0
        %1288 = vmatprep.subr.mxu0 0.0
        %1289 = vmatpush1.msra.mxu0 0.0
        %1290 = vmatprep.subr.mxu0 0.0
        %1291 = vmatpush1.msra.mxu0 0.0
        %1292 = vmatprep.subr.mxu0 0.0
        %1293 = vmatpush1.msra.mxu0 0.0
        %1294 = vmatprep.subr.mxu0 0.0
        %1295 = vmatpush1.msra.mxu0 0.0
        %1296 = vmatprep.subr.mxu0 0.0
        %1297 = vmatpush1.msra.mxu0 0.0
        %1298 = vmatprep.subr.mxu0 0.0
        %1299 = vmatpush1.msra.mxu0 0.0
        %1300 = vmatprep.subr.mxu0 0.0
        %1301 = vmatpush1.msra.mxu0 0.0
        %1302 = vmatprep.subr.mxu0 0.0
        %1303 = vmatpush1.msra.mxu0 0.0
        %1304 = vmatprep.subr.mxu0 0.0
        %1305 = vmatpush1.msra.mxu0 0.0
        %1306 = vmatprep.subr.mxu0 0.0
        %1307 = vmatpush1.msra.mxu0 0.0
        %1308 = vmatprep.subr.mxu0 0.0
        %1309 = vmatpush1.msra.mxu0 0.0
        %1310 = vmatprep.subr.mxu0 0.0
        %1311 = vmatpush1.msra.mxu0 0.0
        %1312 = vmatprep.subr.mxu0 0.0
        %1313 = vmatpush1.msra.mxu0 0.0
        %1314 = vmatprep.subr.mxu0 0.0
        %1315 = vmatpush1.msra.mxu0 0.0
        %1316 = vmatprep.mubr.f32.mxu0 0.0
        %1317 = vmatmul.mubr.f32.gmra.mrb[0].mxu0 %v758
        %v1318 = vpop.f32.mrb[0].mxu0
        %v1319 = vadd.f32 %v884, %v1318
        %v1320 = vpop.f32.mrb[0].mxu0
        %v1321 = vadd.f32 %v888, %v1320
        %1322 = vmatprep.mubr.f32.mxu0 0.0
        %1323 = vmatmul.mubr.f32.gmra.mrb[0].mxu0 %v759
        %v1324 = vpop.f32.mrb[0].mxu0
        %v1325 = vadd.f32 %v884, %v1324
        %v1326 = vpop.f32.mrb[0].mxu0
        %v1327 = vadd.f32 %v888, %v1326
        %1328 = vmatprep.mubr.f32.mxu0 0.0
        %1329 = vmatmul.mubr.f32.gmra.mrb[0].mxu0 %v760
        %v1330 = vpop.f32.mrb[0].mxu0
        %v1331 = vadd.f32 %v884, %v1330
        %v1332 = vpop.f32.mrb[0].mxu0
        %v1333 = vadd.f32 %v888, %v1332
        %1334 = vmatprep.mubr.f32.mxu0 0.0
        %1335 = vmatmul.mubr.f32.gmra.mrb[0].mxu0 %v761
        %v1336 = vpop.f32.mrb[0].mxu0
        %v1337 = vadd.f32 %v884, %v1336
        %v1338 = vpop.f32.mrb[0].mxu0
        %v1339 = vadd.f32 %v888, %v1338
        %1340 = vmatprep.mubr.f32.mxu0 0.0
        %1341 = vmatmul.mubr.f32.gmra.mrb[0].mxu0 %v762
        %v1342 = vpop.f32.mrb[0].mxu0
        %v1343 = vadd.f32 %v884, %v1342
        %v1344 = vpop.f32.mrb[0].mxu0
        %v1345 = vadd.f32 %v888, %v1344
        %1346 = vmatprep.mubr.f32.mxu0 0.0
        %1347 = vmatmul.mubr.f32.gmra.mrb[0].mxu0 %v763
        %v1348 = vpop.f32.mrb[0].mxu0
        %v1349 = vadd.f32 %v884, %v1348
        %v1350 = vpop.f32.mrb[0].mxu0
        %v1351 = vadd.f32 %v888, %v1350
        %1352 = vmatprep.mubr.f32.mxu0 0.0
        %1353 = vmatmul.mubr.f32.gmra.mrb[0].mxu0 %v764
        %v1354 = vpop.f32.mrb[0].mxu0
        %v1355 = vadd.f32 %v884, %v1354
        %v1356 = vpop.f32.mrb[0].mxu0
        %v1357 = vadd.f32 %v888, %v1356
        %1358 = vmatprep.mubr.f32.mxu0 0.0
        %1359 = vmatmul.mubr.f32.gmra.mrb[0].mxu0 %v765
        %v1360 = vpop.f32.mrb[0].mxu0
        %v1361 = vadd.f32 %v884, %v1360
        %v1362 = vpop.f32.mrb[0].mxu0
        %v1363 = vadd.f32 %v888, %v1362
        %1364 = vmatprep.mubr.f32.mxu0 0.0
        %1365 = vmatmul.mubr.f32.gmra.mrb[0].mxu0 %v766
        %v1366 = vpop.f32.mrb[0].mxu0
        %v1367 = vadd.f32 %v884, %v1366
        %v1368 = vpop.f32.mrb[0].mxu0
        %v1369 = vadd.f32 %v888, %v1368
        %1370 = vmatprep.mubr.f32.mxu0 0.0
        %1371 = vmatmul.mubr.f32.gmra.mrb[0].mxu0 %v767
        %v1372 = vpop.f32.mrb[0].mxu0
        %v1373 = vadd.f32 %v884, %v1372
        %v1374 = vpop.f32.mrb[0].mxu0
        %v1375 = vadd.f32 %v888, %v1374
        %1376 = vmatprep.mubr.f32.mxu0 0.0
        %1377 = vmatmul.mubr.f32.gmra.mrb[0].mxu0 %v768
        %v1378 = vpop.f32.mrb[0].mxu0
        %v1379 = vadd.f32 %v884, %v1378
        %v1380 = vpop.f32.mrb[0].mxu0
        %v1381 = vadd.f32 %v888, %v1380
        %1382 = vmatprep.mubr.f32.mxu0 0.0
        %1383 = vmatmul.mubr.f32.gmra.mrb[0].mxu0 %v769
        %v1384 = vpop.f32.mrb[0].mxu0
        %v1385 = vadd.f32 %v884, %v1384
        %v1386 = vpop.f32.mrb[0].mxu0
        %v1387 = vadd.f32 %v888, %v1386
        %1388 = vmatprep.mubr.f32.mxu0 0.0
        %1389 = vmatmul.mubr.f32.gmra.mrb[0].mxu0 %v770
        %v1390 = vpop.f32.mrb[0].mxu0
        %v1391 = vadd.f32 %v884, %v1390
        %v1392 = vpop.f32.mrb[0].mxu0
        %v1393 = vadd.f32 %v888, %v1392
        %1394 = vmatprep.mubr.f32.mxu0 0.0
        %1395 = vmatmul.mubr.f32.gmra.mrb[0].mxu0 %v771
        %v1396 = vpop.f32.mrb[0].mxu0
        %v1397 = vadd.f32 %v884, %v1396
        %v1398 = vpop.f32.mrb[0].mxu0
        %v1399 = vadd.f32 %v888, %v1398
        %1400 = vmatprep.mubr.f32.mxu0 0.0
        %1401 = vmatmul.mubr.f32.gmra.mrb[0].mxu0 %v772
        %v1402 = vpop.f32.mrb[0].mxu0
        %v1403 = vadd.f32 %v884, %v1402
        %v1404 = vpop.f32.mrb[0].mxu0
        %v1405 = vadd.f32 %v888, %v1404
        %1406 = vmatprep.mubr.f32.mxu0 0.0
        %1407 = vmatmul.mubr.f32.gmra.mrb[0].mxu0 %v773
        %v1408 = vpop.f32.mrb[0].mxu0
        %v1409 = vadd.f32 %v884, %v1408
        %v1410 = vpop.f32.mrb[0].mxu0
        %v1411 = vadd.f32 %v888, %v1410
        %1412 = vmatprep.mubr.f32.mxu0 0.0
        %1413 = vmatmul.mubr.f32.gmra.mrb[0].mxu0 %v774
        %v1414 = vpop.f32.mrb[0].mxu0
        %v1415 = vadd.f32 %v884, %v1414
        %v1416 = vpop.f32.mrb[0].mxu0
        %v1417 = vadd.f32 %v888, %v1416
        %1418 = vmatprep.mubr.f32.mxu0 0.0
        %1419 = vmatmul.mubr.f32.gmra.mrb[0].mxu0 %v775
        %v1420 = vpop.f32.mrb[0].mxu0
        %v1421 = vadd.f32 %v884, %v1420
        %v1422 = vpop.f32.mrb[0].mxu0
        %v1423 = vadd.f32 %v888, %v1422
        %1424 = vmatprep.mubr.f32.mxu0 0.0
        %1425 = vmatmul.mubr.f32.gmra.mrb[0].mxu0 %v776
        %v1426 = vpop.f32.mrb[0].mxu0
        %v1427 = vadd.f32 %v884, %v1426
        %v1428 = vpop.f32.mrb[0].mxu0
        %v1429 = vadd.f32 %v888, %v1428
        %1430 = vmatprep.mubr.f32.mxu0 0.0
        %1431 = vmatmul.mubr.f32.gmra.mrb[0].mxu0 %v777
        %v1432 = vpop.f32.mrb[0].mxu0
        %v1433 = vadd.f32 %v884, %v1432
        %v1434 = vpop.f32.mrb[0].mxu0
        %v1435 = vadd.f32 %v888, %v1434
        %1436 = vmatprep.mubr.f32.mxu0 0.0
        %1437 = vmatmul.mubr.f32.gmra.mrb[0].mxu0 %v778
        %v1438 = vpop.f32.mrb[0].mxu0
        %v1439 = vadd.f32 %v884, %v1438
        %v1440 = vpop.f32.mrb[0].mxu0
        %v1441 = vadd.f32 %v888, %v1440
        %1442 = vmatprep.mubr.f32.mxu0 0.0
        %1443 = vmatmul.mubr.f32.gmra.mrb[0].mxu0 %v779
        %v1444 = vpop.f32.mrb[0].mxu0
        %v1445 = vadd.f32 %v884, %v1444
        %v1446 = vpop.f32.mrb[0].mxu0
        %v1447 = vadd.f32 %v888, %v1446
        %1448 = vmatprep.mubr.f32.mxu0 0.0
        %1449 = vmatmul.mubr.f32.gmra.mrb[0].mxu0 %v780
        %v1450 = vpop.f32.mrb[0].mxu0
        %v1451 = vadd.f32 %v884, %v1450
        %v1452 = vpop.f32.mrb[0].mxu0
        %v1453 = vadd.f32 %v888, %v1452
        %1454 = vmatprep.mubr.f32.mxu0 0.0
        %1455 = vmatmul.mubr.f32.gmra.mrb[0].mxu0 %v781
        %v1456 = vpop.f32.mrb[0].mxu0
        %v1457 = vadd.f32 %v884, %v1456
        %v1458 = vpop.f32.mrb[0].mxu0
        %v1459 = vadd.f32 %v888, %v1458
        %1460 = vmatprep.mubr.f32.mxu0 0.0
        %1461 = vmatmul.mubr.f32.gmra.mrb[0].mxu0 %v782
        %v1462 = vpop.f32.mrb[0].mxu0
        %v1463 = vadd.f32 %v884, %v1462
        %v1464 = vpop.f32.mrb[0].mxu0
        %v1465 = vadd.f32 %v888, %v1464
        %1466 = vmatprep.mubr.f32.mxu0 0.0
        %1467 = vmatmul.mubr.f32.gmra.mrb[0].mxu0 %v783
        %v1468 = vpop.f32.mrb[0].mxu0
        %v1469 = vadd.f32 %v884, %v1468
        %v1470 = vpop.f32.mrb[0].mxu0
        %v1471 = vadd.f32 %v888, %v1470
        %1472 = vmatprep.mubr.f32.mxu0 0.0
        %1473 = vmatmul.mubr.f32.gmra.mrb[0].mxu0 %v784
        %v1474 = vpop.f32.mrb[0].mxu0
        %v1475 = vadd.f32 %v884, %v1474
        %v1476 = vpop.f32.mrb[0].mxu0
        %v1477 = vadd.f32 %v888, %v1476
        %1478 = vmatprep.mubr.f32.mxu0 0.0
        %1479 = vmatmul.mubr.f32.gmra.mrb[0].mxu0 %v785
        %v1480 = vpop.f32.mrb[0].mxu0
        %v1481 = vadd.f32 %v884, %v1480
        %v1482 = vpop.f32.mrb[0].mxu0
        %v1483 = vadd.f32 %v888, %v1482
        %1484 = vmatprep.mubr.f32.mxu0 0.0
        %1485 = vmatmul.mubr.f32.gmra.mrb[0].mxu0 %v786
        %v1486 = vpop.f32.mrb[0].mxu0
        %v1487 = vadd.f32 %v884, %v1486
        %v1488 = vpop.f32.mrb[0].mxu0
        %v1489 = vadd.f32 %v888, %v1488
        %1490 = vmatprep.mubr.f32.mxu0 0.0
        %1491 = vmatmul.mubr.f32.gmra.mrb[0].mxu0 %v787
        %v1492 = vpop.f32.mrb[0].mxu0
        %v1493 = vadd.f32 %v884, %v1492
        %v1494 = vpop.f32.mrb[0].mxu0
        %v1495 = vadd.f32 %v888, %v1494
        %1496 = vmatprep.mubr.f32.mxu0 0.0
        %1497 = vmatmul.mubr.f32.gmra.mrb[0].mxu0 %v788
        %v1498 = vpop.f32.mrb[0].mxu0
        %v1499 = vadd.f32 %v884, %v1498
        %v1500 = vpop.f32.mrb[0].mxu0
        %v1501 = vadd.f32 %v888, %v1500
        %1502 = vmatprep.mubr.f32.mxu0 0.0
        %1503 = vmatmul.mubr.f32.gmra.mrb[0].mxu0 %v789
        %v1504 = vpop.f32.mrb[0].mxu0
        %v1505 = vadd.f32 %v884, %v1504
        %v1506 = vpop.f32.mrb[0].mxu0
        %v1507 = vadd.f32 %v888, %v1506
        %1508 = vmatprep.mubr.f32.mxu0 0.0
        %1509 = vmatmul.mubr.f32.gmra.mrb[0].mxu0 %v790
        %v1510 = vpop.f32.mrb[0].mxu0
        %v1511 = vadd.f32 %v884, %v1510
        %v1512 = vpop.f32.mrb[0].mxu0
        %v1513 = vadd.f32 %v888, %v1512
        %1514 = vmatprep.mubr.f32.mxu0 0.0
        %1515 = vmatmul.mubr.f32.gmra.mrb[0].mxu0 %v791
        %v1516 = vpop.f32.mrb[0].mxu0
        %v1517 = vadd.f32 %v884, %v1516
        %v1518 = vpop.f32.mrb[0].mxu0
        %v1519 = vadd.f32 %v888, %v1518
        %1520 = vmatprep.mubr.f32.mxu0 0.0
        %1521 = vmatmul.mubr.f32.gmra.mrb[0].mxu0 %v792
        %v1522 = vpop.f32.mrb[0].mxu0
        %v1523 = vadd.f32 %v884, %v1522
        %v1524 = vpop.f32.mrb[0].mxu0
        %v1525 = vadd.f32 %v888, %v1524
        %1526 = vmatprep.mubr.f32.mxu0 0.0
        %1527 = vmatmul.mubr.f32.gmra.mrb[0].mxu0 %v793
        %v1528 = vpop.f32.mrb[0].mxu0
        %v1529 = vadd.f32 %v884, %v1528
        %v1530 = vpop.f32.mrb[0].mxu0
        %v1531 = vadd.f32 %v888, %v1530
        %1532 = vmatprep.mubr.f32.mxu0 0.0
        %1533 = vmatmul.mubr.f32.gmra.mrb[0].mxu0 %v794
        %v1534 = vpop.f32.mrb[0].mxu0
        %v1535 = vadd.f32 %v884, %v1534
        %v1536 = vpop.f32.mrb[0].mxu0
        %v1537 = vadd.f32 %v888, %v1536
        %1538 = vmatprep.mubr.f32.mxu0 0.0
        %1539 = vmatmul.mubr.f32.gmra.mrb[0].mxu0 %v795
        %v1540 = vpop.f32.mrb[0].mxu0
        %v1541 = vadd.f32 %v884, %v1540
        %v1542 = vpop.f32.mrb[0].mxu0
        %v1543 = vadd.f32 %v888, %v1542
        %1544 = vmatprep.mubr.f32.mxu0 0.0
        %1545 = vmatmul.mubr.f32.gmra.mrb[0].mxu0 %v796
        %v1546 = vpop.f32.mrb[0].mxu0
        %v1547 = vadd.f32 %v884, %v1546
        %v1548 = vpop.f32.mrb[0].mxu0
        %v1549 = vadd.f32 %v888, %v1548
        %1550 = vmatprep.mubr.f32.mxu0 0.0
        %1551 = vmatmul.mubr.f32.gmra.mrb[0].mxu0 %v797
        %v1552 = vpop.f32.mrb[0].mxu0
        %v1553 = vadd.f32 %v884, %v1552
        %v1554 = vpop.f32.mrb[0].mxu0
        %v1555 = vadd.f32 %v888, %v1554
        %1556 = vmatprep.mubr.f32.mxu0 0.0
        %1557 = vmatmul.mubr.f32.gmra.mrb[0].mxu0 %v798
        %v1558 = vpop.f32.mrb[0].mxu0
        %v1559 = vadd.f32 %v884, %v1558
        %v1560 = vpop.f32.mrb[0].mxu0
        %v1561 = vadd.f32 %v888, %v1560
        %1562 = vmatprep.mubr.f32.mxu0 0.0
        %1563 = vmatmul.mubr.f32.gmra.mrb[0].mxu0 %v799
        %v1564 = vpop.f32.mrb[0].mxu0
        %v1565 = vadd.f32 %v884, %v1564
        %v1566 = vpop.f32.mrb[0].mxu0
        %v1567 = vadd.f32 %v888, %v1566
        %1568 = vmatprep.mubr.f32.mxu0 0.0
        %1569 = vmatmul.mubr.f32.gmra.mrb[0].mxu0 %v800
        %v1570 = vpop.f32.mrb[0].mxu0
        %v1571 = vadd.f32 %v884, %v1570
        %v1572 = vpop.f32.mrb[0].mxu0
        %v1573 = vadd.f32 %v888, %v1572
        %1574 = vmatprep.mubr.f32.mxu0 0.0
        %1575 = vmatmul.mubr.f32.gmra.mrb[0].mxu0 %v801
        %v1576 = vpop.f32.mrb[0].mxu0
        %v1577 = vadd.f32 %v884, %v1576
        %v1578 = vpop.f32.mrb[0].mxu0
        %v1579 = vadd.f32 %v888, %v1578
        %1580 = vmatprep.mubr.f32.mxu0 0.0
        %1581 = vmatmul.mubr.f32.gmra.mrb[0].mxu0 %v802
        %v1582 = vpop.f32.mrb[0].mxu0
        %v1583 = vadd.f32 %v884, %v1582
        %v1584 = vpop.f32.mrb[0].mxu0
        %v1585 = vadd.f32 %v888, %v1584
        %1586 = vmatprep.mubr.f32.mxu0 0.0
        %1587 = vmatmul.mubr.f32.gmra.mrb[0].mxu0 %v803
        %v1588 = vpop.f32.mrb[0].mxu0
        %v1589 = vadd.f32 %v884, %v1588
        %v1590 = vpop.f32.mrb[0].mxu0
        %v1591 = vadd.f32 %v888, %v1590
        %1592 = vmatprep.mubr.f32.mxu0 0.0
        %1593 = vmatmul.mubr.f32.gmra.mrb[0].mxu0 %v804
        %v1594 = vpop.f32.mrb[0].mxu0
        %v1595 = vadd.f32 %v884, %v1594
        %v1596 = vpop.f32.mrb[0].mxu0
        %v1597 = vadd.f32 %v888, %v1596
        %1598 = vmatprep.mubr.f32.mxu0 0.0
        %1599 = vmatmul.mubr.f32.gmra.mrb[0].mxu0 %v805
        %v1600 = vpop.f32.mrb[0].mxu0
        %v1601 = vadd.f32 %v884, %v1600
        %v1602 = vpop.f32.mrb[0].mxu0
        %v1603 = vadd.f32 %v888, %v1602
        %1604 = vmatprep.mubr.f32.mxu0 0.0
        %1605 = vmatmul.mubr.f32.gmra.mrb[0].mxu0 %v806
        %v1606 = vpop.f32.mrb[0].mxu0
        %v1607 = vadd.f32 %v884, %v1606
        %v1608 = vpop.f32.mrb[0].mxu0
        %v1609 = vadd.f32 %v888, %v1608
        %1610 = vdwg.mxu0
        %v1611 = vmul.f32 %v960, 0.5
        %v1612 = vmul.f32 %v962, 0.5
        %v1613 = vmul.f32 %v1319, 0.5
        %v1614 = vmul.f32 %v1321, 0.5
        %v1615 = vmul.f32 %v966, 0.5
        %v1616 = vmul.f32 %v968, 0.5
        %v1617 = vmul.f32 %v1325, 0.5
        %v1618 = vmul.f32 %v1327, 0.5
        %v1619 = vmul.f32 %v972, 0.5
        %v1620 = vmul.f32 %v974, 0.5
        %v1621 = vmul.f32 %v1331, 0.5
        %v1622 = vmul.f32 %v1333, 0.5
        %v1623 = vmul.f32 %v978, 0.5
        %v1624 = vmul.f32 %v980, 0.5
        %v1625 = vmul.f32 %v1337, 0.5
        %v1626 = vmul.f32 %v1339, 0.5
        %v1627 = vmul.f32 %v984, 0.5
        %v1628 = vmul.f32 %v986, 0.5
        %v1629 = vmul.f32 %v1343, 0.5
        %v1630 = vmul.f32 %v1345, 0.5
        %v1631 = vmul.f32 %v990, 0.5
        %v1632 = vmul.f32 %v992, 0.5
        %v1633 = vmul.f32 %v1349, 0.5
        %v1634 = vmul.f32 %v1351, 0.5
        %v1635 = vmul.f32 %v996, 0.5
        %v1636 = vmul.f32 %v998, 0.5
        %v1637 = vmul.f32 %v1355, 0.5
        %v1638 = vmul.f32 %v1357, 0.5
        %v1639 = vmul.f32 %v1002, 0.5
        %v1640 = vmul.f32 %v1004, 0.5
        %v1641 = vmul.f32 %v1361, 0.5
        %v1642 = vmul.f32 %v1363, 0.5
        %v1643 = vmul.f32 %v1008, 0.5
        %v1644 = vmul.f32 %v1010, 0.5
        %v1645 = vmul.f32 %v1367, 0.5
        %v1646 = vmul.f32 %v1369, 0.5
        %v1647 = vmul.f32 %v1014, 0.5
        %v1648 = vmul.f32 %v1016, 0.5
        %v1649 = vmul.f32 %v1373, 0.5
        %v1650 = vmul.f32 %v1375, 0.5
        %v1651 = vmul.f32 %v1020, 0.5
        %v1652 = vmul.f32 %v1022, 0.5
        %v1653 = vmul.f32 %v1379, 0.5
        %v1654 = vmul.f32 %v1381, 0.5
        %v1655 = vmul.f32 %v1026, 0.5
        %v1656 = vmul.f32 %v1028, 0.5
        %v1657 = vmul.f32 %v1385, 0.5
        %v1658 = vmul.f32 %v1387, 0.5
        %v1659 = vmul.f32 %v1032, 0.5
        %v1660 = vmul.f32 %v1034, 0.5
        %v1661 = vmul.f32 %v1391, 0.5
        %v1662 = vmul.f32 %v1393, 0.5
        %v1663 = vmul.f32 %v1038, 0.5
        %v1664 = vmul.f32 %v1040, 0.5
        %v1665 = vmul.f32 %v1397, 0.5
        %v1666 = vmul.f32 %v1399, 0.5
        %v1667 = vmul.f32 %v1044, 0.5
        %v1668 = vmul.f32 %v1046, 0.5
        %v1669 = vmul.f32 %v1403, 0.5
        %v1670 = vmul.f32 %v1405, 0.5
        %v1671 = vmul.f32 %v1050, 0.5
        %v1672 = vmul.f32 %v1052, 0.5
        %v1673 = vmul.f32 %v1409, 0.5
        %v1674 = vmul.f32 %v1411, 0.5
        %v1675 = vmul.f32 %v1056, 0.5
        %v1676 = vmul.f32 %v1058, 0.5
        %v1677 = vmul.f32 %v1415, 0.5
        %v1678 = vmul.f32 %v1417, 0.5
        %v1679 = vmul.f32 %v1062, 0.5
        %v1680 = vmul.f32 %v1064, 0.5
        %v1681 = vmul.f32 %v1421, 0.5
        %v1682 = vmul.f32 %v1423, 0.5
        %v1683 = vmul.f32 %v1068, 0.5
        %v1684 = vmul.f32 %v1070, 0.5
        %v1685 = vmul.f32 %v1427, 0.5
        %v1686 = vmul.f32 %v1429, 0.5
        %v1687 = vmul.f32 %v1074, 0.5
        %v1688 = vmul.f32 %v1076, 0.5
        %v1689 = vmul.f32 %v1433, 0.5
        %v1690 = vmul.f32 %v1435, 0.5
        %v1691 = vmul.f32 %v1080, 0.5
        %v1692 = vmul.f32 %v1082, 0.5
        %v1693 = vmul.f32 %v1439, 0.5
        %v1694 = vmul.f32 %v1441, 0.5
        %v1695 = vmul.f32 %v1086, 0.5
        %v1696 = vmul.f32 %v1088, 0.5
        %v1697 = vmul.f32 %v1445, 0.5
        %v1698 = vmul.f32 %v1447, 0.5
        %v1699 = vmul.f32 %v1092, 0.5
        %v1700 = vmul.f32 %v1094, 0.5
        %v1701 = vmul.f32 %v1451, 0.5
        %v1702 = vmul.f32 %v1453, 0.5
        %v1703 = vmul.f32 %v1098, 0.5
        %v1704 = vmul.f32 %v1100, 0.5
        %v1705 = vmul.f32 %v1457, 0.5
        %v1706 = vmul.f32 %v1459, 0.5
        %v1707 = vmul.f32 %v1104, 0.5
        %v1708 = vmul.f32 %v1106, 0.5
        %v1709 = vmul.f32 %v1463, 0.5
        %v1710 = vmul.f32 %v1465, 0.5
        %v1711 = vmul.f32 %v1110, 0.5
        %v1712 = vmul.f32 %v1112, 0.5
        %v1713 = vmul.f32 %v1469, 0.5
        %v1714 = vmul.f32 %v1471, 0.5
        %v1715 = vmul.f32 %v1116, 0.5
        %v1716 = vmul.f32 %v1118, 0.5
        %v1717 = vmul.f32 %v1475, 0.5
        %v1718 = vmul.f32 %v1477, 0.5
        %v1719 = vmul.f32 %v1122, 0.5
        %v1720 = vmul.f32 %v1124, 0.5
        %v1721 = vmul.f32 %v1481, 0.5
        %v1722 = vmul.f32 %v1483, 0.5
        %v1723 = vmul.f32 %v1128, 0.5
        %v1724 = vmul.f32 %v1130, 0.5
        %v1725 = vmul.f32 %v1487, 0.5
        %v1726 = vmul.f32 %v1489, 0.5
        %v1727 = vmul.f32 %v1134, 0.5
        %v1728 = vmul.f32 %v1136, 0.5
        %v1729 = vmul.f32 %v1493, 0.5
        %v1730 = vmul.f32 %v1495, 0.5
        %v1731 = vmul.f32 %v1140, 0.5
        %v1732 = vmul.f32 %v1142, 0.5
        %v1733 = vmul.f32 %v1499, 0.5
        %v1734 = vmul.f32 %v1501, 0.5
        %v1735 = vmul.f32 %v1146, 0.5
        %v1736 = vmul.f32 %v1148, 0.5
        %v1737 = vmul.f32 %v1505, 0.5
        %v1738 = vmul.f32 %v1507, 0.5
        %v1739 = vmul.f32 %v1152, 0.5
        %v1740 = vmul.f32 %v1154, 0.5
        %v1741 = vmul.f32 %v1511, 0.5
        %v1742 = vmul.f32 %v1513, 0.5
        %v1743 = vmul.f32 %v1158, 0.5
        %v1744 = vmul.f32 %v1160, 0.5
        %v1745 = vmul.f32 %v1517, 0.5
        %v1746 = vmul.f32 %v1519, 0.5
        %v1747 = vmul.f32 %v1164, 0.5
        %v1748 = vmul.f32 %v1166, 0.5
        %v1749 = vmul.f32 %v1523, 0.5
        %v1750 = vmul.f32 %v1525, 0.5
        %v1751 = vmul.f32 %v1170, 0.5
        %v1752 = vmul.f32 %v1172, 0.5
        %v1753 = vmul.f32 %v1529, 0.5
        %v1754 = vmul.f32 %v1531, 0.5
        %v1755 = vmul.f32 %v1176, 0.5
        %v1756 = vmul.f32 %v1178, 0.5
        %v1757 = vmul.f32 %v1535, 0.5
        %v1758 = vmul.f32 %v1537, 0.5
        %v1759 = vmul.f32 %v1182, 0.5
        %v1760 = vmul.f32 %v1184, 0.5
        %v1761 = vmul.f32 %v1541, 0.5
        %v1762 = vmul.f32 %v1543, 0.5
        %v1763 = vmul.f32 %v1188, 0.5
        %v1764 = vmul.f32 %v1190, 0.5
        %v1765 = vmul.f32 %v1547, 0.5
        %v1766 = vmul.f32 %v1549, 0.5
        %v1767 = vmul.f32 %v1194, 0.5
        %v1768 = vmul.f32 %v1196, 0.5
        %v1769 = vmul.f32 %v1553, 0.5
        %v1770 = vmul.f32 %v1555, 0.5
        %v1771 = vmul.f32 %v1200, 0.5
        %v1772 = vmul.f32 %v1202, 0.5
        %v1773 = vmul.f32 %v1559, 0.5
        %v1774 = vmul.f32 %v1561, 0.5
        %v1775 = vmul.f32 %v1206, 0.5
        %v1776 = vmul.f32 %v1208, 0.5
        %v1777 = vmul.f32 %v1565, 0.5
        %v1778 = vmul.f32 %v1567, 0.5
        %v1779 = vmul.f32 %v1212, 0.5
        %v1780 = vmul.f32 %v1214, 0.5
        %v1781 = vmul.f32 %v1571, 0.5
        %v1782 = vmul.f32 %v1573, 0.5
        %v1783 = vmul.f32 %v1218, 0.5
        %v1784 = vmul.f32 %v1220, 0.5
        %v1785 = vmul.f32 %v1577, 0.5
        %v1786 = vmul.f32 %v1579, 0.5
        %v1787 = vmul.f32 %v1224, 0.5
        %v1788 = vmul.f32 %v1226, 0.5
        %v1789 = vmul.f32 %v1583, 0.5
        %v1790 = vmul.f32 %v1585, 0.5
        %v1791 = vmul.f32 %v1230, 0.5
        %v1792 = vmul.f32 %v1232, 0.5
        %v1793 = vmul.f32 %v1589, 0.5
        %v1794 = vmul.f32 %v1591, 0.5
        %v1795 = vmul.f32 %v1236, 0.5
        %v1796 = vmul.f32 %v1238, 0.5
        %v1797 = vmul.f32 %v1595, 0.5
        %v1798 = vmul.f32 %v1597, 0.5
        %v1799 = vmul.f32 %v1242, 0.5
        %v1800 = vmul.f32 %v1244, 0.5
        %v1801 = vmul.f32 %v1601, 0.5
        %v1802 = vmul.f32 %v1603, 0.5
        %v1803 = vmul.f32 %v1248, 0.5
        %v1804 = vmul.f32 %v1250, 0.5
        %v1805 = vmul.f32 %v1607, 0.5
        %v1806 = vmul.f32 %v1609, 0.5
        %v1807 = vmul.f32 %v960, 0.70710677
        %v1808 = vmul.f32 %v962, 0.70710677
        %v1809 = vmul.f32 %v1319, 0.70710677
        %v1810 = vmul.f32 %v1321, 0.70710677
        %v1811 = vmul.f32 %v966, 0.70710677
        %v1812 = vmul.f32 %v968, 0.70710677
        %v1813 = vmul.f32 %v1325, 0.70710677
        %v1814 = vmul.f32 %v1327, 0.70710677
        %v1815 = vmul.f32 %v972, 0.70710677
        %v1816 = vmul.f32 %v974, 0.70710677
        %v1817 = vmul.f32 %v1331, 0.70710677
        %v1818 = vmul.f32 %v1333, 0.70710677
        %v1819 = vmul.f32 %v978, 0.70710677
        %v1820 = vmul.f32 %v980, 0.70710677
        %v1821 = vmul.f32 %v1337, 0.70710677
        %v1822 = vmul.f32 %v1339, 0.70710677
        %v1823 = vmul.f32 %v984, 0.70710677
        %v1824 = vmul.f32 %v986, 0.70710677
        %v1825 = vmul.f32 %v1343, 0.70710677
        %v1826 = vmul.f32 %v1345, 0.70710677
        %v1827 = vmul.f32 %v990, 0.70710677
        %v1828 = vmul.f32 %v992, 0.70710677
        %v1829 = vmul.f32 %v1349, 0.70710677
        %v1830 = vmul.f32 %v1351, 0.70710677
        %v1831 = vmul.f32 %v996, 0.70710677
        %v1832 = vmul.f32 %v998, 0.70710677
        %v1833 = vmul.f32 %v1355, 0.70710677
        %v1834 = vmul.f32 %v1357, 0.70710677
        %v1835 = vmul.f32 %v1002, 0.70710677
        %v1836 = vmul.f32 %v1004, 0.70710677
        %v1837 = vmul.f32 %v1361, 0.70710677
        %v1838 = vmul.f32 %v1363, 0.70710677
        %v1839 = vmul.f32 %v1008, 0.70710677
        %v1840 = vmul.f32 %v1010, 0.70710677
        %v1841 = vmul.f32 %v1367, 0.70710677
        %v1842 = vmul.f32 %v1369, 0.70710677
        %v1843 = vmul.f32 %v1014, 0.70710677
        %v1844 = vmul.f32 %v1016, 0.70710677
        %v1845 = vmul.f32 %v1373, 0.70710677
        %v1846 = vmul.f32 %v1375, 0.70710677
        %v1847 = vmul.f32 %v1020, 0.70710677
        %v1848 = vmul.f32 %v1022, 0.70710677
        %v1849 = vmul.f32 %v1379, 0.70710677
        %v1850 = vmul.f32 %v1381, 0.70710677
        %v1851 = vmul.f32 %v1026, 0.70710677
        %v1852 = vmul.f32 %v1028, 0.70710677
        %v1853 = vmul.f32 %v1385, 0.70710677
        %v1854 = vmul.f32 %v1387, 0.70710677
        %v1855 = vmul.f32 %v1032, 0.70710677
        %v1856 = vmul.f32 %v1034, 0.70710677
        %v1857 = vmul.f32 %v1391, 0.70710677
        %v1858 = vmul.f32 %v1393, 0.70710677
        %v1859 = vmul.f32 %v1038, 0.70710677
        %v1860 = vmul.f32 %v1040, 0.70710677
        %v1861 = vmul.f32 %v1397, 0.70710677
        %v1862 = vmul.f32 %v1399, 0.70710677
        %v1863 = vmul.f32 %v1044, 0.70710677
        %v1864 = vmul.f32 %v1046, 0.70710677
        %v1865 = vmul.f32 %v1403, 0.70710677
        %v1866 = vmul.f32 %v1405, 0.70710677
        %v1867 = vmul.f32 %v1050, 0.70710677
        %v1868 = vmul.f32 %v1052, 0.70710677
        %v1869 = vmul.f32 %v1409, 0.70710677
        %v1870 = vmul.f32 %v1411, 0.70710677
        %v1871 = vmul.f32 %v1056, 0.70710677
        %v1872 = vmul.f32 %v1058, 0.70710677
        %v1873 = vmul.f32 %v1415, 0.70710677
        %v1874 = vmul.f32 %v1417, 0.70710677
        %v1875 = vmul.f32 %v1062, 0.70710677
        %v1876 = vmul.f32 %v1064, 0.70710677
        %v1877 = vmul.f32 %v1421, 0.70710677
        %v1878 = vmul.f32 %v1423, 0.70710677
        %v1879 = vmul.f32 %v1068, 0.70710677
        %v1880 = vmul.f32 %v1070, 0.70710677
        %v1881 = vmul.f32 %v1427, 0.70710677
        %v1882 = vmul.f32 %v1429, 0.70710677
        %v1883 = vmul.f32 %v1074, 0.70710677
        %v1884 = vmul.f32 %v1076, 0.70710677
        %v1885 = vmul.f32 %v1433, 0.70710677
        %v1886 = vmul.f32 %v1435, 0.70710677
        %v1887 = vmul.f32 %v1080, 0.70710677
        %v1888 = vmul.f32 %v1082, 0.70710677
        %v1889 = vmul.f32 %v1439, 0.70710677
        %v1890 = vmul.f32 %v1441, 0.70710677
        %v1891 = vmul.f32 %v1086, 0.70710677
        %v1892 = vmul.f32 %v1088, 0.70710677
        %v1893 = vmul.f32 %v1445, 0.70710677
        %v1894 = vmul.f32 %v1447, 0.70710677
        %v1895 = vmul.f32 %v1092, 0.70710677
        %v1896 = vmul.f32 %v1094, 0.70710677
        %v1897 = vmul.f32 %v1451, 0.70710677
        %v1898 = vmul.f32 %v1453, 0.70710677
        %v1899 = vmul.f32 %v1098, 0.70710677
        %v1900 = vmul.f32 %v1100, 0.70710677
        %v1901 = vmul.f32 %v1457, 0.70710677
        %v1902 = vmul.f32 %v1459, 0.70710677
        %v1903 = vmul.f32 %v1104, 0.70710677
        %v1904 = vmul.f32 %v1106, 0.70710677
        %v1905 = vmul.f32 %v1463, 0.70710677
        %v1906 = vmul.f32 %v1465, 0.70710677
        %v1907 = vmul.f32 %v1110, 0.70710677
        %v1908 = vmul.f32 %v1112, 0.70710677
        %v1909 = vmul.f32 %v1469, 0.70710677
        %v1910 = vmul.f32 %v1471, 0.70710677
        %v1911 = vmul.f32 %v1116, 0.70710677
        %v1912 = vmul.f32 %v1118, 0.70710677
        %v1913 = vmul.f32 %v1475, 0.70710677
        %v1914 = vmul.f32 %v1477, 0.70710677
        %v1915 = vmul.f32 %v1122, 0.70710677
        %v1916 = vmul.f32 %v1124, 0.70710677
        %v1917 = vmul.f32 %v1481, 0.70710677
        %v1918 = vmul.f32 %v1483, 0.70710677
        %v1919 = vmul.f32 %v1128, 0.70710677
        %v1920 = vmul.f32 %v1130, 0.70710677
        %v1921 = vmul.f32 %v1487, 0.70710677
        %v1922 = vmul.f32 %v1489, 0.70710677
        %v1923 = vmul.f32 %v1134, 0.70710677
        %v1924 = vmul.f32 %v1136, 0.70710677
        %v1925 = vmul.f32 %v1493, 0.70710677
        %v1926 = vmul.f32 %v1495, 0.70710677
        %v1927 = vmul.f32 %v1140, 0.70710677
        %v1928 = vmul.f32 %v1142, 0.70710677
        %v1929 = vmul.f32 %v1499, 0.70710677
        %v1930 = vmul.f32 %v1501, 0.70710677
        %v1931 = vmul.f32 %v1146, 0.70710677
        %v1932 = vmul.f32 %v1148, 0.70710677
        %v1933 = vmul.f32 %v1505, 0.70710677
        %v1934 = vmul.f32 %v1507, 0.70710677
        %v1935 = vmul.f32 %v1152, 0.70710677
        %v1936 = vmul.f32 %v1154, 0.70710677
        %v1937 = vmul.f32 %v1511, 0.70710677
        %v1938 = vmul.f32 %v1513, 0.70710677
        %v1939 = vmul.f32 %v1158, 0.70710677
        %v1940 = vmul.f32 %v1160, 0.70710677
        %v1941 = vmul.f32 %v1517, 0.70710677
        %v1942 = vmul.f32 %v1519, 0.70710677
        %v1943 = vmul.f32 %v1164, 0.70710677
        %v1944 = vmul.f32 %v1166, 0.70710677
        %v1945 = vmul.f32 %v1523, 0.70710677
        %v1946 = vmul.f32 %v1525, 0.70710677
        %v1947 = vmul.f32 %v1170, 0.70710677
        %v1948 = vmul.f32 %v1172, 0.70710677
        %v1949 = vmul.f32 %v1529, 0.70710677
        %v1950 = vmul.f32 %v1531, 0.70710677
        %v1951 = vmul.f32 %v1176, 0.70710677
        %v1952 = vmul.f32 %v1178, 0.70710677
        %v1953 = vmul.f32 %v1535, 0.70710677
        %v1954 = vmul.f32 %v1537, 0.70710677
        %v1955 = vmul.f32 %v1182, 0.70710677
        %v1956 = vmul.f32 %v1184, 0.70710677
        %v1957 = vmul.f32 %v1541, 0.70710677
        %v1958 = vmul.f32 %v1543, 0.70710677
        %v1959 = vmul.f32 %v1188, 0.70710677
        %v1960 = vmul.f32 %v1190, 0.70710677
        %v1961 = vmul.f32 %v1547, 0.70710677
        %v1962 = vmul.f32 %v1549, 0.70710677
        %v1963 = vmul.f32 %v1194, 0.70710677
        %v1964 = vmul.f32 %v1196, 0.70710677
        %v1965 = vmul.f32 %v1553, 0.70710677
        %v1966 = vmul.f32 %v1555, 0.70710677
        %v1967 = vmul.f32 %v1200, 0.70710677
        %v1968 = vmul.f32 %v1202, 0.70710677
        %v1969 = vmul.f32 %v1559, 0.70710677
        %v1970 = vmul.f32 %v1561, 0.70710677
        %v1971 = vmul.f32 %v1206, 0.70710677
        %v1972 = vmul.f32 %v1208, 0.70710677
        %v1973 = vmul.f32 %v1565, 0.70710677
        %v1974 = vmul.f32 %v1567, 0.70710677
        %v1975 = vmul.f32 %v1212, 0.70710677
        %v1976 = vmul.f32 %v1214, 0.70710677
        %v1977 = vmul.f32 %v1571, 0.70710677
        %v1978 = vmul.f32 %v1573, 0.70710677
        %v1979 = vmul.f32 %v1218, 0.70710677
        %v1980 = vmul.f32 %v1220, 0.70710677
        %v1981 = vmul.f32 %v1577, 0.70710677
        %v1982 = vmul.f32 %v1579, 0.70710677
        %v1983 = vmul.f32 %v1224, 0.70710677
        %v1984 = vmul.f32 %v1226, 0.70710677
        %v1985 = vmul.f32 %v1583, 0.70710677
        %v1986 = vmul.f32 %v1585, 0.70710677
        %v1987 = vmul.f32 %v1230, 0.70710677
        %v1988 = vmul.f32 %v1232, 0.70710677
        %v1989 = vmul.f32 %v1589, 0.70710677
        %v1990 = vmul.f32 %v1591, 0.70710677
        %v1991 = vmul.f32 %v1236, 0.70710677
        %v1992 = vmul.f32 %v1238, 0.70710677
        %v1993 = vmul.f32 %v1595, 0.70710677
        %v1994 = vmul.f32 %v1597, 0.70710677
        %v1995 = vmul.f32 %v1242, 0.70710677
        %v1996 = vmul.f32 %v1244, 0.70710677
        %v1997 = vmul.f32 %v1601, 0.70710677
        %v1998 = vmul.f32 %v1603, 0.70710677
        %v1999 = vmul.f32 %v1248, 0.70710677
        %v2000 = vmul.f32 %v1250, 0.70710677
        %v2001 = vmul.f32 %v1607, 0.70710677
        %v2002 = vmul.f32 %v1609, 0.70710677
        %v2003 = verf.f32.pop %v1807
        %v2004 = verf.f32.pop %v1808
        %v2005 = verf.f32.pop %v1809
        %v2006 = verf.f32.pop %v1810
        %v2007 = verf.f32.pop %v1811
        %v2008 = verf.f32.pop %v1812
        %v2009 = verf.f32.pop %v1813
        %v2010 = verf.f32.pop %v1814
        %v2011 = verf.f32.pop %v1815
        %v2012 = verf.f32.pop %v1816
        %v2013 = verf.f32.pop %v1817
        %v2014 = verf.f32.pop %v1818
        %v2015 = verf.f32.pop %v1819
        %v2016 = verf.f32.pop %v1820
        %v2017 = verf.f32.pop %v1821
        %v2018 = verf.f32.pop %v1822
        %v2019 = verf.f32.pop %v1823
        %v2020 = verf.f32.pop %v1824
        %v2021 = verf.f32.pop %v1825
        %v2022 = verf.f32.pop %v1826
        %v2023 = verf.f32.pop %v1827
        %v2024 = verf.f32.pop %v1828
        %v2025 = verf.f32.pop %v1829
        %v2026 = verf.f32.pop %v1830
        %v2027 = verf.f32.pop %v1831
        %v2028 = verf.f32.pop %v1832
        %v2029 = verf.f32.pop %v1833
        %v2030 = verf.f32.pop %v1834
        %v2031 = verf.f32.pop %v1835
        %v2032 = verf.f32.pop %v1836
        %v2033 = verf.f32.pop %v1837
        %v2034 = verf.f32.pop %v1838
        %v2035 = verf.f32.pop %v1839
        %v2036 = verf.f32.pop %v1840
        %v2037 = verf.f32.pop %v1841
        %v2038 = verf.f32.pop %v1842
        %v2039 = verf.f32.pop %v1843
        %v2040 = verf.f32.pop %v1844
        %v2041 = verf.f32.pop %v1845
        %v2042 = verf.f32.pop %v1846
        %v2043 = verf.f32.pop %v1847
        %v2044 = verf.f32.pop %v1848
        %v2045 = verf.f32.pop %v1849
        %v2046 = verf.f32.pop %v1850
        %v2047 = verf.f32.pop %v1851
        %v2048 = verf.f32.pop %v1852
        %v2049 = verf.f32.pop %v1853
        %v2050 = verf.f32.pop %v1854
        %v2051 = verf.f32.pop %v1855
        %v2052 = verf.f32.pop %v1856
        %v2053 = verf.f32.pop %v1857
        %v2054 = verf.f32.pop %v1858
        %v2055 = verf.f32.pop %v1859
        %v2056 = verf.f32.pop %v1860
        %v2057 = verf.f32.pop %v1861
        %v2058 = verf.f32.pop %v1862
        %v2059 = verf.f32.pop %v1863
        %v2060 = verf.f32.pop %v1864
        %v2061 = verf.f32.pop %v1865
        %v2062 = verf.f32.pop %v1866
        %v2063 = verf.f32.pop %v1867
        %v2064 = verf.f32.pop %v1868
        %v2065 = verf.f32.pop %v1869
        %v2066 = verf.f32.pop %v1870
        %v2067 = verf.f32.pop %v1871
        %v2068 = verf.f32.pop %v1872
        %v2069 = verf.f32.pop %v1873
        %v2070 = verf.f32.pop %v1874
        %v2071 = verf.f32.pop %v1875
        %v2072 = verf.f32.pop %v1876
        %v2073 = verf.f32.pop %v1877
        %v2074 = verf.f32.pop %v1878
        %v2075 = verf.f32.pop %v1879
        %v2076 = verf.f32.pop %v1880
        %v2077 = verf.f32.pop %v1881
        %v2078 = verf.f32.pop %v1882
        %v2079 = verf.f32.pop %v1883
        %v2080 = verf.f32.pop %v1884
        %v2081 = verf.f32.pop %v1885
        %v2082 = verf.f32.pop %v1886
        %v2083 = verf.f32.pop %v1887
        %v2084 = verf.f32.pop %v1888
        %v2085 = verf.f32.pop %v1889
        %v2086 = verf.f32.pop %v1890
        %v2087 = verf.f32.pop %v1891
        %v2088 = verf.f32.pop %v1892
        %v2089 = verf.f32.pop %v1893
        %v2090 = verf.f32.pop %v1894
        %v2091 = verf.f32.pop %v1895
        %v2092 = verf.f32.pop %v1896
        %v2093 = verf.f32.pop %v1897
        %v2094 = verf.f32.pop %v1898
        %v2095 = verf.f32.pop %v1899
        %v2096 = verf.f32.pop %v1900
        %v2097 = verf.f32.pop %v1901
        %v2098 = verf.f32.pop %v1902
        %v2099 = verf.f32.pop %v1903
        %v2100 = verf.f32.pop %v1904
        %v2101 = verf.f32.pop %v1905
        %v2102 = verf.f32.pop %v1906
        %v2103 = verf.f32.pop %v1907
        %v2104 = verf.f32.pop %v1908
        %v2105 = verf.f32.pop %v1909
        %v2106 = verf.f32.pop %v1910
        %v2107 = verf.f32.pop %v1911
        %v2108 = verf.f32.pop %v1912
        %v2109 = verf.f32.pop %v1913
        %v2110 = verf.f32.pop %v1914
        %v2111 = verf.f32.pop %v1915
        %v2112 = verf.f32.pop %v1916
        %v2113 = verf.f32.pop %v1917
        %v2114 = verf.f32.pop %v1918
        %v2115 = verf.f32.pop %v1919
        %v2116 = verf.f32.pop %v1920
        %v2117 = verf.f32.pop %v1921
        %v2118 = verf.f32.pop %v1922
        %v2119 = verf.f32.pop %v1923
        %v2120 = verf.f32.pop %v1924
        %v2121 = verf.f32.pop %v1925
        %v2122 = verf.f32.pop %v1926
        %v2123 = verf.f32.pop %v1927
        %v2124 = verf.f32.pop %v1928
        %v2125 = verf.f32.pop %v1929
        %v2126 = verf.f32.pop %v1930
        %v2127 = verf.f32.pop %v1931
        %v2128 = verf.f32.pop %v1932
        %v2129 = verf.f32.pop %v1933
        %v2130 = verf.f32.pop %v1934
        %v2131 = verf.f32.pop %v1935
        %v2132 = verf.f32.pop %v1936
        %v2133 = verf.f32.pop %v1937
        %v2134 = verf.f32.pop %v1938
        %v2135 = verf.f32.pop %v1939
        %v2136 = verf.f32.pop %v1940
        %v2137 = verf.f32.pop %v1941
        %v2138 = verf.f32.pop %v1942
        %v2139 = verf.f32.pop %v1943
        %v2140 = verf.f32.pop %v1944
        %v2141 = verf.f32.pop %v1945
        %v2142 = verf.f32.pop %v1946
        %v2143 = verf.f32.pop %v1947
        %v2144 = verf.f32.pop %v1948
        %v2145 = verf.f32.pop %v1949
        %v2146 = verf.f32.pop %v1950
        %v2147 = verf.f32.pop %v1951
        %v2148 = verf.f32.pop %v1952
        %v2149 = verf.f32.pop %v1953
        %v2150 = verf.f32.pop %v1954
        %v2151 = verf.f32.pop %v1955
        %v2152 = verf.f32.pop %v1956
        %v2153 = verf.f32.pop %v1957
        %v2154 = verf.f32.pop %v1958
        %v2155 = verf.f32.pop %v1959
        %v2156 = verf.f32.pop %v1960
        %v2157 = verf.f32.pop %v1961
        %v2158 = verf.f32.pop %v1962
        %v2159 = verf.f32.pop %v1963
        %v2160 = verf.f32.pop %v1964
        %v2161 = verf.f32.pop %v1965
        %v2162 = verf.f32.pop %v1966
        %v2163 = verf.f32.pop %v1967
        %v2164 = verf.f32.pop %v1968
        %v2165 = verf.f32.pop %v1969
        %v2166 = verf.f32.pop %v1970
        %v2167 = verf.f32.pop %v1971
        %v2168 = verf.f32.pop %v1972
        %v2169 = verf.f32.pop %v1973
        %v2170 = verf.f32.pop %v1974
        %v2171 = verf.f32.pop %v1975
        %v2172 = verf.f32.pop %v1976
        %v2173 = verf.f32.pop %v1977
        %v2174 = verf.f32.pop %v1978
        %v2175 = verf.f32.pop %v1979
        %v2176 = verf.f32.pop %v1980
        %v2177 = verf.f32.pop %v1981
        %v2178 = verf.f32.pop %v1982
        %v2179 = verf.f32.pop %v1983
        %v2180 = verf.f32.pop %v1984
        %v2181 = verf.f32.pop %v1985
        %v2182 = verf.f32.pop %v1986
        %v2183 = verf.f32.pop %v1987
        %v2184 = verf.f32.pop %v1988
        %v2185 = verf.f32.pop %v1989
        %v2186 = verf.f32.pop %v1990
        %v2187 = verf.f32.pop %v1991
        %v2188 = verf.f32.pop %v1992
        %v2189 = verf.f32.pop %v1993
        %v2190 = verf.f32.pop %v1994
        %v2191 = verf.f32.pop %v1995
        %v2192 = verf.f32.pop %v1996
        %v2193 = verf.f32.pop %v1997
        %v2194 = verf.f32.pop %v1998
        %v2195 = verf.f32.pop %v1999
        %v2196 = verf.f32.pop %v2000
        %v2197 = verf.f32.pop %v2001
        %v2198 = verf.f32.pop %v2002
        %v2199 = vadd.f32 %v2003, 1.0
        %v2200 = vadd.f32 %v2004, 1.0
        %v2201 = vadd.f32 %v2005, 1.0
        %v2202 = vadd.f32 %v2006, 1.0
        %v2203 = vadd.f32 %v2007, 1.0
        %v2204 = vadd.f32 %v2008, 1.0
        %v2205 = vadd.f32 %v2009, 1.0
        %v2206 = vadd.f32 %v2010, 1.0
        %v2207 = vadd.f32 %v2011, 1.0
        %v2208 = vadd.f32 %v2012, 1.0
        %v2209 = vadd.f32 %v2013, 1.0
        %v2210 = vadd.f32 %v2014, 1.0
        %v2211 = vadd.f32 %v2015, 1.0
        %v2212 = vadd.f32 %v2016, 1.0
        %v2213 = vadd.f32 %v2017, 1.0
        %v2214 = vadd.f32 %v2018, 1.0
        %v2215 = vadd.f32 %v2019, 1.0
        %v2216 = vadd.f32 %v2020, 1.0
        %v2217 = vadd.f32 %v2021, 1.0
        %v2218 = vadd.f32 %v2022, 1.0
        %v2219 = vadd.f32 %v2023, 1.0
        %v2220 = vadd.f32 %v2024, 1.0
        %v2221 = vadd.f32 %v2025, 1.0
        %v2222 = vadd.f32 %v2026, 1.0
        %v2223 = vadd.f32 %v2027, 1.0
        %v2224 = vadd.f32 %v2028, 1.0
        %v2225 = vadd.f32 %v2029, 1.0
        %v2226 = vadd.f32 %v2030, 1.0
        %v2227 = vadd.f32 %v2031, 1.0
        %v2228 = vadd.f32 %v2032, 1.0
        %v2229 = vadd.f32 %v2033, 1.0
        %v2230 = vadd.f32 %v2034, 1.0
        %v2231 = vadd.f32 %v2035, 1.0
        %v2232 = vadd.f32 %v2036, 1.0
        %v2233 = vadd.f32 %v2037, 1.0
        %v2234 = vadd.f32 %v2038, 1.0
        %v2235 = vadd.f32 %v2039, 1.0
        %v2236 = vadd.f32 %v2040, 1.0
        %v2237 = vadd.f32 %v2041, 1.0
        %v2238 = vadd.f32 %v2042, 1.0
        %v2239 = vadd.f32 %v2043, 1.0
        %v2240 = vadd.f32 %v2044, 1.0
        %v2241 = vadd.f32 %v2045, 1.0
        %v2242 = vadd.f32 %v2046, 1.0
        %v2243 = vadd.f32 %v2047, 1.0
        %v2244 = vadd.f32 %v2048, 1.0
        %v2245 = vadd.f32 %v2049, 1.0
        %v2246 = vadd.f32 %v2050, 1.0
        %v2247 = vadd.f32 %v2051, 1.0
        %v2248 = vadd.f32 %v2052, 1.0
        %v2249 = vadd.f32 %v2053, 1.0
        %v2250 = vadd.f32 %v2054, 1.0
        %v2251 = vadd.f32 %v2055, 1.0
        %v2252 = vadd.f32 %v2056, 1.0
        %v2253 = vadd.f32 %v2057, 1.0
        %v2254 = vadd.f32 %v2058, 1.0
        %v2255 = vadd.f32 %v2059, 1.0
        %v2256 = vadd.f32 %v2060, 1.0
        %v2257 = vadd.f32 %v2061, 1.0
        %v2258 = vadd.f32 %v2062, 1.0
        %v2259 = vadd.f32 %v2063, 1.0
        %v2260 = vadd.f32 %v2064, 1.0
        %v2261 = vadd.f32 %v2065, 1.0
        %v2262 = vadd.f32 %v2066, 1.0
        %v2263 = vadd.f32 %v2067, 1.0
        %v2264 = vadd.f32 %v2068, 1.0
        %v2265 = vadd.f32 %v2069, 1.0
        %v2266 = vadd.f32 %v2070, 1.0
        %v2267 = vadd.f32 %v2071, 1.0
        %v2268 = vadd.f32 %v2072, 1.0
        %v2269 = vadd.f32 %v2073, 1.0
        %v2270 = vadd.f32 %v2074, 1.0
        %v2271 = vadd.f32 %v2075, 1.0
        %v2272 = vadd.f32 %v2076, 1.0
        %v2273 = vadd.f32 %v2077, 1.0
        %v2274 = vadd.f32 %v2078, 1.0
        %v2275 = vadd.f32 %v2079, 1.0
        %v2276 = vadd.f32 %v2080, 1.0
        %v2277 = vadd.f32 %v2081, 1.0
        %v2278 = vadd.f32 %v2082, 1.0
        %v2279 = vadd.f32 %v2083, 1.0
        %v2280 = vadd.f32 %v2084, 1.0
        %v2281 = vadd.f32 %v2085, 1.0
        %v2282 = vadd.f32 %v2086, 1.0
        %v2283 = vadd.f32 %v2087, 1.0
        %v2284 = vadd.f32 %v2088, 1.0
        %v2285 = vadd.f32 %v2089, 1.0
        %v2286 = vadd.f32 %v2090, 1.0
        %v2287 = vadd.f32 %v2091, 1.0
        %v2288 = vadd.f32 %v2092, 1.0
        %v2289 = vadd.f32 %v2093, 1.0
        %v2290 = vadd.f32 %v2094, 1.0
        %v2291 = vadd.f32 %v2095, 1.0
        %v2292 = vadd.f32 %v2096, 1.0
        %v2293 = vadd.f32 %v2097, 1.0
        %v2294 = vadd.f32 %v2098, 1.0
        %v2295 = vadd.f32 %v2099, 1.0
        %v2296 = vadd.f32 %v2100, 1.0
        %v2297 = vadd.f32 %v2101, 1.0
        %v2298 = vadd.f32 %v2102, 1.0
        %v2299 = vadd.f32 %v2103, 1.0
        %v2300 = vadd.f32 %v2104, 1.0
        %v2301 = vadd.f32 %v2105, 1.0
        %v2302 = vadd.f32 %v2106, 1.0
        %v2303 = vadd.f32 %v2107, 1.0
        %v2304 = vadd.f32 %v2108, 1.0
        %v2305 = vadd.f32 %v2109, 1.0
        %v2306 = vadd.f32 %v2110, 1.0
        %v2307 = vadd.f32 %v2111, 1.0
        %v2308 = vadd.f32 %v2112, 1.0
        %v2309 = vadd.f32 %v2113, 1.0
        %v2310 = vadd.f32 %v2114, 1.0
        %v2311 = vadd.f32 %v2115, 1.0
        %v2312 = vadd.f32 %v2116, 1.0
        %v2313 = vadd.f32 %v2117, 1.0
        %v2314 = vadd.f32 %v2118, 1.0
        %v2315 = vadd.f32 %v2119, 1.0
        %v2316 = vadd.f32 %v2120, 1.0
        %v2317 = vadd.f32 %v2121, 1.0
        %v2318 = vadd.f32 %v2122, 1.0
        %v2319 = vadd.f32 %v2123, 1.0
        %v2320 = vadd.f32 %v2124, 1.0
        %v2321 = vadd.f32 %v2125, 1.0
        %v2322 = vadd.f32 %v2126, 1.0
        %v2323 = vadd.f32 %v2127, 1.0
        %v2324 = vadd.f32 %v2128, 1.0
        %v2325 = vadd.f32 %v2129, 1.0
        %v2326 = vadd.f32 %v2130, 1.0
        %v2327 = vadd.f32 %v2131, 1.0
        %v2328 = vadd.f32 %v2132, 1.0
        %v2329 = vadd.f32 %v2133, 1.0
        %v2330 = vadd.f32 %v2134, 1.0
        %v2331 = vadd.f32 %v2135, 1.0
        %v2332 = vadd.f32 %v2136, 1.0
        %v2333 = vadd.f32 %v2137, 1.0
        %v2334 = vadd.f32 %v2138, 1.0
        %v2335 = vadd.f32 %v2139, 1.0
        %v2336 = vadd.f32 %v2140, 1.0
        %v2337 = vadd.f32 %v2141, 1.0
        %v2338 = vadd.f32 %v2142, 1.0
        %v2339 = vadd.f32 %v2143, 1.0
        %v2340 = vadd.f32 %v2144, 1.0
        %v2341 = vadd.f32 %v2145, 1.0
        %v2342 = vadd.f32 %v2146, 1.0
        %v2343 = vadd.f32 %v2147, 1.0
        %v2344 = vadd.f32 %v2148, 1.0
        %v2345 = vadd.f32 %v2149, 1.0
        %v2346 = vadd.f32 %v2150, 1.0
        %v2347 = vadd.f32 %v2151, 1.0
        %v2348 = vadd.f32 %v2152, 1.0
        %v2349 = vadd.f32 %v2153, 1.0
        %v2350 = vadd.f32 %v2154, 1.0
        %v2351 = vadd.f32 %v2155, 1.0
        %v2352 = vadd.f32 %v2156, 1.0
        %v2353 = vadd.f32 %v2157, 1.0
        %v2354 = vadd.f32 %v2158, 1.0
        %v2355 = vadd.f32 %v2159, 1.0
        %v2356 = vadd.f32 %v2160, 1.0
        %v2357 = vadd.f32 %v2161, 1.0
        %v2358 = vadd.f32 %v2162, 1.0
        %v2359 = vadd.f32 %v2163, 1.0
        %v2360 = vadd.f32 %v2164, 1.0
        %v2361 = vadd.f32 %v2165, 1.0
        %v2362 = vadd.f32 %v2166, 1.0
        %v2363 = vadd.f32 %v2167, 1.0
        %v2364 = vadd.f32 %v2168, 1.0
        %v2365 = vadd.f32 %v2169, 1.0
        %v2366 = vadd.f32 %v2170, 1.0
        %v2367 = vadd.f32 %v2171, 1.0
        %v2368 = vadd.f32 %v2172, 1.0
        %v2369 = vadd.f32 %v2173, 1.0
        %v2370 = vadd.f32 %v2174, 1.0
        %v2371 = vadd.f32 %v2175, 1.0
        %v2372 = vadd.f32 %v2176, 1.0
        %v2373 = vadd.f32 %v2177, 1.0
        %v2374 = vadd.f32 %v2178, 1.0
        %v2375 = vadd.f32 %v2179, 1.0
        %v2376 = vadd.f32 %v2180, 1.0
        %v2377 = vadd.f32 %v2181, 1.0
        %v2378 = vadd.f32 %v2182, 1.0
        %v2379 = vadd.f32 %v2183, 1.0
        %v2380 = vadd.f32 %v2184, 1.0
        %v2381 = vadd.f32 %v2185, 1.0
        %v2382 = vadd.f32 %v2186, 1.0
        %v2383 = vadd.f32 %v2187, 1.0
        %v2384 = vadd.f32 %v2188, 1.0
        %v2385 = vadd.f32 %v2189, 1.0
        %v2386 = vadd.f32 %v2190, 1.0
        %v2387 = vadd.f32 %v2191, 1.0
        %v2388 = vadd.f32 %v2192, 1.0
        %v2389 = vadd.f32 %v2193, 1.0
        %v2390 = vadd.f32 %v2194, 1.0
        %v2391 = vadd.f32 %v2195, 1.0
        %v2392 = vadd.f32 %v2196, 1.0
        %v2393 = vadd.f32 %v2197, 1.0
        %v2394 = vadd.f32 %v2198, 1.0
        %v2395 = vmul.f32 %v1611, %v2199
        %v2396 = vmul.f32 %v1612, %v2200
        %v2397 = vmul.f32 %v1613, %v2201
        %v2398 = vmul.f32 %v1614, %v2202
        %v2399 = vmul.f32 %v1615, %v2203
        %v2400 = vmul.f32 %v1616, %v2204
        %v2401 = vmul.f32 %v1617, %v2205
        %v2402 = vmul.f32 %v1618, %v2206
        %v2403 = vmul.f32 %v1619, %v2207
        %v2404 = vmul.f32 %v1620, %v2208
        %v2405 = vmul.f32 %v1621, %v2209
        %v2406 = vmul.f32 %v1622, %v2210
        %v2407 = vmul.f32 %v1623, %v2211
        %v2408 = vmul.f32 %v1624, %v2212
        %v2409 = vmul.f32 %v1625, %v2213
        %v2410 = vmul.f32 %v1626, %v2214
        %v2411 = vmul.f32 %v1627, %v2215
        %v2412 = vmul.f32 %v1628, %v2216
        %v2413 = vmul.f32 %v1629, %v2217
        %v2414 = vmul.f32 %v1630, %v2218
        %v2415 = vmul.f32 %v1631, %v2219
        %v2416 = vmul.f32 %v1632, %v2220
        %v2417 = vmul.f32 %v1633, %v2221
        %v2418 = vmul.f32 %v1634, %v2222
        %v2419 = vmul.f32 %v1635, %v2223
        %v2420 = vmul.f32 %v1636, %v2224
        %v2421 = vmul.f32 %v1637, %v2225
        %v2422 = vmul.f32 %v1638, %v2226
        %v2423 = vmul.f32 %v1639, %v2227
        %v2424 = vmul.f32 %v1640, %v2228
        %v2425 = vmul.f32 %v1641, %v2229
        %v2426 = vmul.f32 %v1642, %v2230
        %v2427 = vmul.f32 %v1643, %v2231
        %v2428 = vmul.f32 %v1644, %v2232
        %v2429 = vmul.f32 %v1645, %v2233
        %v2430 = vmul.f32 %v1646, %v2234
        %v2431 = vmul.f32 %v1647, %v2235
        %v2432 = vmul.f32 %v1648, %v2236
        %v2433 = vmul.f32 %v1649, %v2237
        %v2434 = vmul.f32 %v1650, %v2238
        %v2435 = vmul.f32 %v1651, %v2239
        %v2436 = vmul.f32 %v1652, %v2240
        %v2437 = vmul.f32 %v1653, %v2241
        %v2438 = vmul.f32 %v1654, %v2242
        %v2439 = vmul.f32 %v1655, %v2243
        %v2440 = vmul.f32 %v1656, %v2244
        %v2441 = vmul.f32 %v1657, %v2245
        %v2442 = vmul.f32 %v1658, %v2246
        %v2443 = vmul.f32 %v1659, %v2247
        %v2444 = vmul.f32 %v1660, %v2248
        %v2445 = vmul.f32 %v1661, %v2249
        %v2446 = vmul.f32 %v1662, %v2250
        %v2447 = vmul.f32 %v1663, %v2251
        %v2448 = vmul.f32 %v1664, %v2252
        %v2449 = vmul.f32 %v1665, %v2253
        %v2450 = vmul.f32 %v1666, %v2254
        %v2451 = vmul.f32 %v1667, %v2255
        %v2452 = vmul.f32 %v1668, %v2256
        %v2453 = vmul.f32 %v1669, %v2257
        %v2454 = vmul.f32 %v1670, %v2258
        %v2455 = vmul.f32 %v1671, %v2259
        %v2456 = vmul.f32 %v1672, %v2260
        %v2457 = vmul.f32 %v1673, %v2261
        %v2458 = vmul.f32 %v1674, %v2262
        %v2459 = vmul.f32 %v1675, %v2263
        %v2460 = vmul.f32 %v1676, %v2264
        %v2461 = vmul.f32 %v1677, %v2265
        %v2462 = vmul.f32 %v1678, %v2266
        %v2463 = vmul.f32 %v1679, %v2267
        %v2464 = vmul.f32 %v1680, %v2268
        %v2465 = vmul.f32 %v1681, %v2269
        %v2466 = vmul.f32 %v1682, %v2270
        %v2467 = vmul.f32 %v1683, %v2271
        %v2468 = vmul.f32 %v1684, %v2272
        %v2469 = vmul.f32 %v1685, %v2273
        %v2470 = vmul.f32 %v1686, %v2274
        %v2471 = vmul.f32 %v1687, %v2275
        %v2472 = vmul.f32 %v1688, %v2276
        %v2473 = vmul.f32 %v1689, %v2277
        %v2474 = vmul.f32 %v1690, %v2278
        %v2475 = vmul.f32 %v1691, %v2279
        %v2476 = vmul.f32 %v1692, %v2280
        %v2477 = vmul.f32 %v1693, %v2281
        %v2478 = vmul.f32 %v1694, %v2282
        %v2479 = vmul.f32 %v1695, %v2283
        %v2480 = vmul.f32 %v1696, %v2284
        %v2481 = vmul.f32 %v1697, %v2285
        %v2482 = vmul.f32 %v1698, %v2286
        %v2483 = vmul.f32 %v1699, %v2287
        %v2484 = vmul.f32 %v1700, %v2288
        %v2485 = vmul.f32 %v1701, %v2289
        %v2486 = vmul.f32 %v1702, %v2290
        %v2487 = vmul.f32 %v1703, %v2291
        %v2488 = vmul.f32 %v1704, %v2292
        %v2489 = vmul.f32 %v1705, %v2293
        %v2490 = vmul.f32 %v1706, %v2294
        %v2491 = vmul.f32 %v1707, %v2295
        %v2492 = vmul.f32 %v1708, %v2296
        %v2493 = vmul.f32 %v1709, %v2297
        %v2494 = vmul.f32 %v1710, %v2298
        %v2495 = vmul.f32 %v1711, %v2299
        %v2496 = vmul.f32 %v1712, %v2300
        %v2497 = vmul.f32 %v1713, %v2301
        %v2498 = vmul.f32 %v1714, %v2302
        %v2499 = vmul.f32 %v1715, %v2303
        %v2500 = vmul.f32 %v1716, %v2304
        %v2501 = vmul.f32 %v1717, %v2305
        %v2502 = vmul.f32 %v1718, %v2306
        %v2503 = vmul.f32 %v1719, %v2307
        %v2504 = vmul.f32 %v1720, %v2308
        %v2505 = vmul.f32 %v1721, %v2309
        %v2506 = vmul.f32 %v1722, %v2310
        %v2507 = vmul.f32 %v1723, %v2311
        %v2508 = vmul.f32 %v1724, %v2312
        %v2509 = vmul.f32 %v1725, %v2313
        %v2510 = vmul.f32 %v1726, %v2314
        %v2511 = vmul.f32 %v1727, %v2315
        %v2512 = vmul.f32 %v1728, %v2316
        %v2513 = vmul.f32 %v1729, %v2317
        %v2514 = vmul.f32 %v1730, %v2318
        %v2515 = vmul.f32 %v1731, %v2319
        %v2516 = vmul.f32 %v1732, %v2320
        %v2517 = vmul.f32 %v1733, %v2321
        %v2518 = vmul.f32 %v1734, %v2322
        %v2519 = vmul.f32 %v1735, %v2323
        %v2520 = vmul.f32 %v1736, %v2324
        %v2521 = vmul.f32 %v1737, %v2325
        %v2522 = vmul.f32 %v1738, %v2326
        %v2523 = vmul.f32 %v1739, %v2327
        %v2524 = vmul.f32 %v1740, %v2328
        %v2525 = vmul.f32 %v1741, %v2329
        %v2526 = vmul.f32 %v1742, %v2330
        %v2527 = vmul.f32 %v1743, %v2331
        %v2528 = vmul.f32 %v1744, %v2332
        %v2529 = vmul.f32 %v1745, %v2333
        %v2530 = vmul.f32 %v1746, %v2334
        %v2531 = vmul.f32 %v1747, %v2335
        %v2532 = vmul.f32 %v1748, %v2336
        %v2533 = vmul.f32 %v1749, %v2337
        %v2534 = vmul.f32 %v1750, %v2338
        %v2535 = vmul.f32 %v1751, %v2339
        %v2536 = vmul.f32 %v1752, %v2340
        %v2537 = vmul.f32 %v1753, %v2341
        %v2538 = vmul.f32 %v1754, %v2342
        %v2539 = vmul.f32 %v1755, %v2343
        %v2540 = vmul.f32 %v1756, %v2344
        %v2541 = vmul.f32 %v1757, %v2345
        %v2542 = vmul.f32 %v1758, %v2346
        %v2543 = vmul.f32 %v1759, %v2347
        %v2544 = vmul.f32 %v1760, %v2348
        %v2545 = vmul.f32 %v1761, %v2349
        %v2546 = vmul.f32 %v1762, %v2350
        %v2547 = vmul.f32 %v1763, %v2351
        %v2548 = vmul.f32 %v1764, %v2352
        %v2549 = vmul.f32 %v1765, %v2353
        %v2550 = vmul.f32 %v1766, %v2354
        %v2551 = vmul.f32 %v1767, %v2355
        %v2552 = vmul.f32 %v1768, %v2356
        %v2553 = vmul.f32 %v1769, %v2357
        %v2554 = vmul.f32 %v1770, %v2358
        %v2555 = vmul.f32 %v1771, %v2359
        %v2556 = vmul.f32 %v1772, %v2360
        %v2557 = vmul.f32 %v1773, %v2361
        %v2558 = vmul.f32 %v1774, %v2362
        %v2559 = vmul.f32 %v1775, %v2363
        %v2560 = vmul.f32 %v1776, %v2364
        %v2561 = vmul.f32 %v1777, %v2365
        %v2562 = vmul.f32 %v1778, %v2366
        %v2563 = vmul.f32 %v1779, %v2367
        %v2564 = vmul.f32 %v1780, %v2368
        %v2565 = vmul.f32 %v1781, %v2369
        %v2566 = vmul.f32 %v1782, %v2370
        %v2567 = vmul.f32 %v1783, %v2371
        %v2568 = vmul.f32 %v1784, %v2372
        %v2569 = vmul.f32 %v1785, %v2373
        %v2570 = vmul.f32 %v1786, %v2374
        %v2571 = vmul.f32 %v1787, %v2375
        %v2572 = vmul.f32 %v1788, %v2376
        %v2573 = vmul.f32 %v1789, %v2377
        %v2574 = vmul.f32 %v1790, %v2378
        %v2575 = vmul.f32 %v1791, %v2379
        %v2576 = vmul.f32 %v1792, %v2380
        %v2577 = vmul.f32 %v1793, %v2381
        %v2578 = vmul.f32 %v1794, %v2382
        %v2579 = vmul.f32 %v1795, %v2383
        %v2580 = vmul.f32 %v1796, %v2384
        %v2581 = vmul.f32 %v1797, %v2385
        %v2582 = vmul.f32 %v1798, %v2386
        %v2583 = vmul.f32 %v1799, %v2387
        %v2584 = vmul.f32 %v1800, %v2388
        %v2585 = vmul.f32 %v1801, %v2389
        %v2586 = vmul.f32 %v1802, %v2390
        %v2587 = vmul.f32 %v1803, %v2391
        %v2588 = vmul.f32 %v1804, %v2392
        %v2589 = vmul.f32 %v1805, %v2393
        %v2590 = vmul.f32 %v1806, %v2394
        %2591 = vst [vmem:[%s215] sm:$0xff] %v2395
        %2592 = vst [vmem:[%s215 + $0x8] sm:$0xff] %v2396
        %2593 = vst [vmem:[%s215 + $0x10] sm:$0xff] %v2397
        %2594 = vst [vmem:[%s215 + $0x18] sm:$0xff] %v2398
        %2595 = vst [vmem:[%s215 + $0x20] sm:$0xff] %v2399
        %2596 = vst [vmem:[%s215 + $0x28] sm:$0xff] %v2400
        %2597 = vst [vmem:[%s215 + $0x30] sm:$0xff] %v2401
        %2598 = vst [vmem:[%s215 + $0x38] sm:$0xff] %v2402
        %2599 = vst [vmem:[%s215 + $0x40] sm:$0xff] %v2403
        %2600 = vst [vmem:[%s215 + $0x48] sm:$0xff] %v2404
        %2601 = vst [vmem:[%s215 + $0x50] sm:$0xff] %v2405
        %2602 = vst [vmem:[%s215 + $0x58] sm:$0xff] %v2406
        %2603 = vst [vmem:[%s215 + $0x60] sm:$0xff] %v2407
        %2604 = vst [vmem:[%s215 + $0x68] sm:$0xff] %v2408
        %2605 = vst [vmem:[%s215 + $0x70] sm:$0xff] %v2409
        %2606 = vst [vmem:[%s215 + $0x78] sm:$0xff] %v2410
        %2607 = vst [vmem:[%s215 + $0x80] sm:$0xff] %v2411
        %2608 = vst [vmem:[%s215 + $0x88] sm:$0xff] %v2412
        %2609 = vst [vmem:[%s215 + $0x90] sm:$0xff] %v2413
        %2610 = vst [vmem:[%s215 + $0x98] sm:$0xff] %v2414
        %2611 = vst [vmem:[%s215 + $0xa0] sm:$0xff] %v2415
        %2612 = vst [vmem:[%s215 + $0xa8] sm:$0xff] %v2416
        %2613 = vst [vmem:[%s215 + $0xb0] sm:$0xff] %v2417
        %2614 = vst [vmem:[%s215 + $0xb8] sm:$0xff] %v2418
        %2615 = vst [vmem:[%s215 + $0xc0] sm:$0xff] %v2419
        %2616 = vst [vmem:[%s215 + $0xc8] sm:$0xff] %v2420
        %2617 = vst [vmem:[%s215 + $0xd0] sm:$0xff] %v2421
        %2618 = vst [vmem:[%s215 + $0xd8] sm:$0xff] %v2422
        %2619 = vst [vmem:[%s215 + $0xe0] sm:$0xff] %v2423
        %2620 = vst [vmem:[%s215 + $0xe8] sm:$0xff] %v2424
        %2621 = vst [vmem:[%s215 + $0xf0] sm:$0xff] %v2425
        %2622 = vst [vmem:[%s215 + $0xf8] sm:$0xff] %v2426
        %2623 = vst [vmem:[%s215 + $0x100] sm:$0xff] %v2427
        %2624 = vst [vmem:[%s215 + $0x108] sm:$0xff] %v2428
        %2625 = vst [vmem:[%s215 + $0x110] sm:$0xff] %v2429
        %2626 = vst [vmem:[%s215 + $0x118] sm:$0xff] %v2430
        %2627 = vst [vmem:[%s215 + $0x120] sm:$0xff] %v2431
        %2628 = vst [vmem:[%s215 + $0x128] sm:$0xff] %v2432
        %2629 = vst [vmem:[%s215 + $0x130] sm:$0xff] %v2433
        %2630 = vst [vmem:[%s215 + $0x138] sm:$0xff] %v2434
        %2631 = vst [vmem:[%s215 + $0x140] sm:$0xff] %v2435
        %2632 = vst [vmem:[%s215 + $0x148] sm:$0xff] %v2436
        %2633 = vst [vmem:[%s215 + $0x150] sm:$0xff] %v2437
        %2634 = vst [vmem:[%s215 + $0x158] sm:$0xff] %v2438
        %2635 = vst [vmem:[%s215 + $0x160] sm:$0xff] %v2439
        %2636 = vst [vmem:[%s215 + $0x168] sm:$0xff] %v2440
        %2637 = vst [vmem:[%s215 + $0x170] sm:$0xff] %v2441
        %2638 = vst [vmem:[%s215 + $0x178] sm:$0xff] %v2442
        %2639 = vst [vmem:[%s215 + $0x180] sm:$0xff] %v2443
        %2640 = vst [vmem:[%s215 + $0x188] sm:$0xff] %v2444
        %2641 = vst [vmem:[%s215 + $0x190] sm:$0xff] %v2445
        %2642 = vst [vmem:[%s215 + $0x198] sm:$0xff] %v2446
        %2643 = vst [vmem:[%s215 + $0x1a0] sm:$0xff] %v2447
        %2644 = vst [vmem:[%s215 + $0x1a8] sm:$0xff] %v2448
        %2645 = vst [vmem:[%s215 + $0x1b0] sm:$0xff] %v2449
        %2646 = vst [vmem:[%s215 + $0x1b8] sm:$0xff] %v2450
        %2647 = vst [vmem:[%s215 + $0x1c0] sm:$0xff] %v2451
        %2648 = vst [vmem:[%s215 + $0x1c8] sm:$0xff] %v2452
        %2649 = vst [vmem:[%s215 + $0x1d0] sm:$0xff] %v2453
        %2650 = vst [vmem:[%s215 + $0x1d8] sm:$0xff] %v2454
        %2651 = vst [vmem:[%s215 + $0x1e0] sm:$0xff] %v2455
        %2652 = vst [vmem:[%s215 + $0x1e8] sm:$0xff] %v2456
        %2653 = vst [vmem:[%s215 + $0x1f0] sm:$0xff] %v2457
        %2654 = vst [vmem:[%s215 + $0x1f8] sm:$0xff] %v2458
        %2655 = vst [vmem:[%s215 + $0x200] sm:$0xff] %v2459
        %2656 = vst [vmem:[%s215 + $0x208] sm:$0xff] %v2460
        %2657 = vst [vmem:[%s215 + $0x210] sm:$0xff] %v2461
        %2658 = vst [vmem:[%s215 + $0x218] sm:$0xff] %v2462
        %2659 = vst [vmem:[%s215 + $0x220] sm:$0xff] %v2463
        %2660 = vst [vmem:[%s215 + $0x228] sm:$0xff] %v2464
        %2661 = vst [vmem:[%s215 + $0x230] sm:$0xff] %v2465
        %2662 = vst [vmem:[%s215 + $0x238] sm:$0xff] %v2466
        %2663 = vst [vmem:[%s215 + $0x240] sm:$0xff] %v2467
        %2664 = vst [vmem:[%s215 + $0x248] sm:$0xff] %v2468
        %2665 = vst [vmem:[%s215 + $0x250] sm:$0xff] %v2469
        %2666 = vst [vmem:[%s215 + $0x258] sm:$0xff] %v2470
        %2667 = vst [vmem:[%s215 + $0x260] sm:$0xff] %v2471
        %2668 = vst [vmem:[%s215 + $0x268] sm:$0xff] %v2472
        %2669 = vst [vmem:[%s215 + $0x270] sm:$0xff] %v2473
        %2670 = vst [vmem:[%s215 + $0x278] sm:$0xff] %v2474
        %2671 = vst [vmem:[%s215 + $0x280] sm:$0xff] %v2475
        %2672 = vst [vmem:[%s215 + $0x288] sm:$0xff] %v2476
        %2673 = vst [vmem:[%s215 + $0x290] sm:$0xff] %v2477
        %2674 = vst [vmem:[%s215 + $0x298] sm:$0xff] %v2478
        %2675 = vst [vmem:[%s215 + $0x2a0] sm:$0xff] %v2479
        %2676 = vst [vmem:[%s215 + $0x2a8] sm:$0xff] %v2480
        %2677 = vst [vmem:[%s215 + $0x2b0] sm:$0xff] %v2481
        %2678 = vst [vmem:[%s215 + $0x2b8] sm:$0xff] %v2482
        %2679 = vst [vmem:[%s215 + $0x2c0] sm:$0xff] %v2483
        %2680 = vst [vmem:[%s215 + $0x2c8] sm:$0xff] %v2484
        %2681 = vst [vmem:[%s215 + $0x2d0] sm:$0xff] %v2485
        %2682 = vst [vmem:[%s215 + $0x2d8] sm:$0xff] %v2486
        %2683 = vst [vmem:[%s215 + $0x2e0] sm:$0xff] %v2487
        %2684 = vst [vmem:[%s215 + $0x2e8] sm:$0xff] %v2488
        %2685 = vst [vmem:[%s215 + $0x2f0] sm:$0xff] %v2489
        %2686 = vst [vmem:[%s215 + $0x2f8] sm:$0xff] %v2490
        %2687 = vst [vmem:[%s215 + $0x300] sm:$0xff] %v2491
        %2688 = vst [vmem:[%s215 + $0x308] sm:$0xff] %v2492
        %2689 = vst [vmem:[%s215 + $0x310] sm:$0xff] %v2493
        %2690 = vst [vmem:[%s215 + $0x318] sm:$0xff] %v2494
        %2691 = vst [vmem:[%s215 + $0x320] sm:$0xff] %v2495
        %2692 = vst [vmem:[%s215 + $0x328] sm:$0xff] %v2496
        %2693 = vst [vmem:[%s215 + $0x330] sm:$0xff] %v2497
        %2694 = vst [vmem:[%s215 + $0x338] sm:$0xff] %v2498
        %2695 = vst [vmem:[%s215 + $0x340] sm:$0xff] %v2499
        %2696 = vst [vmem:[%s215 + $0x348] sm:$0xff] %v2500
        %2697 = vst [vmem:[%s215 + $0x350] sm:$0xff] %v2501
        %2698 = vst [vmem:[%s215 + $0x358] sm:$0xff] %v2502
        %2699 = vst [vmem:[%s215 + $0x360] sm:$0xff] %v2503
        %2700 = vst [vmem:[%s215 + $0x368] sm:$0xff] %v2504
        %2701 = vst [vmem:[%s215 + $0x370] sm:$0xff] %v2505
        %2702 = vst [vmem:[%s215 + $0x378] sm:$0xff] %v2506
        %2703 = vst [vmem:[%s215 + $0x380] sm:$0xff] %v2507
        %2704 = vst [vmem:[%s215 + $0x388] sm:$0xff] %v2508
        %2705 = vst [vmem:[%s215 + $0x390] sm:$0xff] %v2509
        %2706 = vst [vmem:[%s215 + $0x398] sm:$0xff] %v2510
        %2707 = vst [vmem:[%s215 + $0x3a0] sm:$0xff] %v2511
        %2708 = vst [vmem:[%s215 + $0x3a8] sm:$0xff] %v2512
        %2709 = vst [vmem:[%s215 + $0x3b0] sm:$0xff] %v2513
        %2710 = vst [vmem:[%s215 + $0x3b8] sm:$0xff] %v2514
        %2711 = vst [vmem:[%s215 + $0x3c0] sm:$0xff] %v2515
        %2712 = vst [vmem:[%s215 + $0x3c8] sm:$0xff] %v2516
        %2713 = vst [vmem:[%s215 + $0x3d0] sm:$0xff] %v2517
        %2714 = vst [vmem:[%s215 + $0x3d8] sm:$0xff] %v2518
        %2715 = vst [vmem:[%s215 + $0x3e0] sm:$0xff] %v2519
        %2716 = vst [vmem:[%s215 + $0x3e8] sm:$0xff] %v2520
        %2717 = vst [vmem:[%s215 + $0x3f0] sm:$0xff] %v2521
        %2718 = vst [vmem:[%s215 + $0x3f8] sm:$0xff] %v2522
        %2719 = vst [vmem:[%s215 + $0x400] sm:$0xff] %v2523
        %2720 = vst [vmem:[%s215 + $0x408] sm:$0xff] %v2524
        %2721 = vst [vmem:[%s215 + $0x410] sm:$0xff] %v2525
        %2722 = vst [vmem:[%s215 + $0x418] sm:$0xff] %v2526
        %2723 = vst [vmem:[%s215 + $0x420] sm:$0xff] %v2527
        %2724 = vst [vmem:[%s215 + $0x428] sm:$0xff] %v2528
        %2725 = vst [vmem:[%s215 + $0x430] sm:$0xff] %v2529
        %2726 = vst [vmem:[%s215 + $0x438] sm:$0xff] %v2530
        %2727 = vst [vmem:[%s215 + $0x440] sm:$0xff] %v2531
        %2728 = vst [vmem:[%s215 + $0x448] sm:$0xff] %v2532
        %2729 = vst [vmem:[%s215 + $0x450] sm:$0xff] %v2533
        %2730 = vst [vmem:[%s215 + $0x458] sm:$0xff] %v2534
        %2731 = vst [vmem:[%s215 + $0x460] sm:$0xff] %v2535
        %2732 = vst [vmem:[%s215 + $0x468] sm:$0xff] %v2536
        %2733 = vst [vmem:[%s215 + $0x470] sm:$0xff] %v2537
        %2734 = vst [vmem:[%s215 + $0x478] sm:$0xff] %v2538
        %2735 = vst [vmem:[%s215 + $0x480] sm:$0xff] %v2539
        %2736 = vst [vmem:[%s215 + $0x488] sm:$0xff] %v2540
        %2737 = vst [vmem:[%s215 + $0x490] sm:$0xff] %v2541
        %2738 = vst [vmem:[%s215 + $0x498] sm:$0xff] %v2542
        %2739 = vst [vmem:[%s215 + $0x4a0] sm:$0xff] %v2543
        %2740 = vst [vmem:[%s215 + $0x4a8] sm:$0xff] %v2544
        %2741 = vst [vmem:[%s215 + $0x4b0] sm:$0xff] %v2545
        %2742 = vst [vmem:[%s215 + $0x4b8] sm:$0xff] %v2546
        %2743 = vst [vmem:[%s215 + $0x4c0] sm:$0xff] %v2547
        %2744 = vst [vmem:[%s215 + $0x4c8] sm:$0xff] %v2548
        %2745 = vst [vmem:[%s215 + $0x4d0] sm:$0xff] %v2549
        %2746 = vst [vmem:[%s215 + $0x4d8] sm:$0xff] %v2550
        %2747 = vst [vmem:[%s215 + $0x4e0] sm:$0xff] %v2551
        %2748 = vst [vmem:[%s215 + $0x4e8] sm:$0xff] %v2552
        %2749 = vst [vmem:[%s215 + $0x4f0] sm:$0xff] %v2553
        %2750 = vst [vmem:[%s215 + $0x4f8] sm:$0xff] %v2554
        %2751 = vst [vmem:[%s215 + $0x500] sm:$0xff] %v2555
        %2752 = vst [vmem:[%s215 + $0x508] sm:$0xff] %v2556
        %2753 = vst [vmem:[%s215 + $0x510] sm:$0xff] %v2557
        %2754 = vst [vmem:[%s215 + $0x518] sm:$0xff] %v2558
        %2755 = vst [vmem:[%s215 + $0x520] sm:$0xff] %v2559
        %2756 = vst [vmem:[%s215 + $0x528] sm:$0xff] %v2560
        %2757 = vst [vmem:[%s215 + $0x530] sm:$0xff] %v2561
        %2758 = vst [vmem:[%s215 + $0x538] sm:$0xff] %v2562
        %2759 = vst [vmem:[%s215 + $0x540] sm:$0xff] %v2563
        %2760 = vst [vmem:[%s215 + $0x548] sm:$0xff] %v2564
        %2761 = vst [vmem:[%s215 + $0x550] sm:$0xff] %v2565
        %2762 = vst [vmem:[%s215 + $0x558] sm:$0xff] %v2566
        %2763 = vst [vmem:[%s215 + $0x560] sm:$0xff] %v2567
        %2764 = vst [vmem:[%s215 + $0x568] sm:$0xff] %v2568
        %2765 = vst [vmem:[%s215 + $0x570] sm:$0xff] %v2569
        %2766 = vst [vmem:[%s215 + $0x578] sm:$0xff] %v2570
        %2767 = vst [vmem:[%s215 + $0x580] sm:$0xff] %v2571
        %2768 = vst [vmem:[%s215 + $0x588] sm:$0xff] %v2572
        %2769 = vst [vmem:[%s215 + $0x590] sm:$0xff] %v2573
        %2770 = vst [vmem:[%s215 + $0x598] sm:$0xff] %v2574
        %2771 = vst [vmem:[%s215 + $0x5a0] sm:$0xff] %v2575
        %2772 = vst [vmem:[%s215 + $0x5a8] sm:$0xff] %v2576
        %2773 = vst [vmem:[%s215 + $0x5b0] sm:$0xff] %v2577
        %2774 = vst [vmem:[%s215 + $0x5b8] sm:$0xff] %v2578
        %2775 = vst [vmem:[%s215 + $0x5c0] sm:$0xff] %v2579
        %2776 = vst [vmem:[%s215 + $0x5c8] sm:$0xff] %v2580
        %2777 = vst [vmem:[%s215 + $0x5d0] sm:$0xff] %v2581
        %2778 = vst [vmem:[%s215 + $0x5d8] sm:$0xff] %v2582
        %2779 = vst [vmem:[%s215 + $0x5e0] sm:$0xff] %v2583
        %2780 = vst [vmem:[%s215 + $0x5e8] sm:$0xff] %v2584
        %2781 = vst [vmem:[%s215 + $0x5f0] sm:$0xff] %v2585
        %2782 = vst [vmem:[%s215 + $0x5f8] sm:$0xff] %v2586
        %2783 = vst [vmem:[%s215 + $0x600] sm:$0xff] %v2587
        %2784 = vst [vmem:[%s215 + $0x608] sm:$0xff] %v2588
        %2785 = vst [vmem:[%s215 + $0x610] sm:$0xff] %v2589
        %2786 = vst [vmem:[%s215 + $0x618] sm:$0xff] %v2590
        %s2787 = sand.u32 %s97, 1
        %s2788 = scalar_lea.sflag [#allocation4], %s2787
        %s2789 = sand.u32 %s97, 1
        %s2790 = smul.addr %s2789, 1568
        %s2791 = scalar_lea.vmem [#allocation8], %s2790
        // Predicated region
        $region45: #{tpu_custom_call.1} parent=31 // pred_check
          %p2792 = pneg %p107
        $region46: #{tpu_custom_call.1} parent=31 // pred_check_branch
          %2794 = sbr.rel (%p2792) target = $region48
        $region47: #{tpu_custom_call.1} parent=31 // pred_region
          %s2795 = smul.u32 49, %s21
          %s2797 = ssub.s32 25088, 25088
          %2798 = vsyncadd %s2788, %s2797
          %s2799 = smul.addr %s2795, 4
          %s2800 = smul.addr %s2799, 128
          %s2801 = scalar_lea.hbm %s3, %s2800
          %s2802 = sshll.u32 %s2791, 4
          %s2803 = int_to_ptr.vmem [resolvable:$true] %s2802
          %2808 = dma.vmem_to_hbm [thread:$0]  %s2803, 25088, %s2801, %s2788, 512, 512, 32
        $region48: #{tpu_custom_call.1} parent=31 // pred_fallthru
          _
      $region32: #{tpu_custom_call.1} parent=5 // pred_fallthru
        _
      %p2809 = scmp.le.s32.totalorder 2, %s16
      // Predicated region
      $region49: #{tpu_custom_call.1} parent=5 // pred_check
        %p2810 = pneg %p2809
      $region50: #{tpu_custom_call.1} parent=5 // pred_check_branch
        %2812 = sbr.rel (%p2810) target = $region52
      $region51: #{tpu_custom_call.1} parent=5 // pred_region
        %s2813 = ssub.s32 %s16, 2
        // Predicated region
        $region53: #{tpu_custom_call.1} parent=51 // pred_check
          %p2814 = pneg %p113
        $region54: #{tpu_custom_call.1} parent=51 // pred_check_branch
          %2816 = sbr.rel (%p2814) target = $region56
        $region55: #{tpu_custom_call.1} parent=51 // pred_region
          %s2817 = sand.u32 %s98, 1
          %s2818 = scalar_lea.sflag [#allocation4], %s2817
          %s2819 = sand.u32 %s98, 1
          %s2820 = smul.addr %s2819, 1568
          %s2821 = scalar_lea.vmem [#allocation8], %s2820
          %2822 = dma.done %s2818, 25088
        $region56: #{tpu_custom_call.1} parent=51 // pred_fallthru
          _
      $region52: #{tpu_custom_call.1} parent=5 // pred_fallthru
        _
    $region6: #{tpu_custom_call.1} parent=1 // loop_footer
      %s20 = sadd.s32 1, %s16
    $region7: #{tpu_custom_call.1} parent=1 // loop_footer_branch
      %15 = sbr.rel target = $region3
    $region8: #{tpu_custom_call.1} parent=1 // loop_exit
      _
    %2823 = vsyncpa [#allocation3], 1
    %s2824 = scalar_lea.sflag [#allocation3], 1
    %2825 = vsyncpa %s2824, 1
    %2826 = vsyncpa [#allocation6], 1
    %2827 = vsyncpa [#allocation4], 1
    %s2828 = scalar_lea.sflag [#allocation4], 1
    %2829 = vsyncpa %s2828, 1

</llo_original>
